<compile_context>
chip_gen: v7x
topology: tpu7x:2x2x1
jax: 0.10.0
libtpu: 0.0.40
codegen_flags: <defaults>
</compile_context>

<pallas_src>
import math
import functools

import jax
import jax.numpy as jnp
from jax.experimental import pallas as pl
from jax.experimental.pallas import tpu as pltpu


# ----------------------------- kernel body -----------------------------------
def _vit_block_kernel(
    x_ref,            # (TB, S, E)  activation block for this grid step (f32)
    ln_g_ref,         # (1, E)   LayerNorm weight (shared by both LN applications)
    ln_b_ref,         # (1, E)   LayerNorm bias
    wqkv_ref,         # (E, 3E)  fused Q|K|V weight (compute dtype; Q cols pre-scaled)
    bqkv_ref,         # (1, 3E)  fused Q|K|V bias   (f32; Q part pre-scaled)
    w1_ref,           # (E, H)   MLP in  weight (compute dtype)
    b1_ref,           # (1, H)   MLP in  bias   (f32)
    w2_ref,           # (H, E)   MLP out weight (compute dtype)
    b2_ref,           # (1, E)   MLP out bias   (f32)
    o_ref,            # (TB, S, E)
    *,
    num_heads: int,
    eps: float,
):
    TB, S, E = x_ref.shape
    nh = num_heads
    hd = E // nh
    R = TB * S
    cdt = wqkv_ref.dtype      # MXU operand dtype (bf16 in production, f32 for parity runs)

    # (TB,S,E) -> (R,E): merges leading dims only (lane dim untouched -> no relayout).
    x = x_ref[...].reshape(R, E).astype(jnp.float32)
    gamma = ln_g_ref[...]
    beta = ln_b_ref[...]

    def layer_norm(v):        # rows independent; element-wise math kept in f32 (v5e-safe)
        mu = jnp.mean(v, axis=-1, keepdims=True)
        c = v - mu
        var = jnp.mean(c * c, axis=-1, keepdims=True)   # biased variance (torch LayerNorm)
        return c * jax.lax.rsqrt(var + eps) * gamma + beta

    # ---- Multi-head self-attention on LN(x): single fused QKV matmul ----
    ln1 = layer_norm(x)
    qkv = jnp.dot(ln1.astype(cdt), wqkv_ref[...],
                  preferred_element_type=jnp.float32) + bqkv_ref[...]       # (R, 3E) f32
    qkv3 = qkv.reshape(TB, S, 3 * E)          # split leading dim only (no relayout)

    # Per-head attention via static lane slices + leading-batch 3-D einsums.
    # No 4-D transposes; the 1/sqrt(E) score scale is already folded into Q.
    # TODO(synk): for S >= ~512 switch to a KV-blocked online-softmax loop instead of
    # materializing the full (TB, S, S) per-head score tile.
    ctx = []
    for h in range(nh):
        q_h = qkv3[:, :, h * hd:(h + 1) * hd].astype(cdt)                  # (TB, S, hd)
        k_h = qkv3[:, :, E + h * hd:E + (h + 1) * hd].astype(cdt)
        v_h = qkv3[:, :, 2 * E + h * hd:2 * E + (h + 1) * hd].astype(cdt)
        s = jnp.einsum("bqd,bkd->bqk", q_h, k_h,
                       preferred_element_type=jnp.float32)                 # (TB, S, S)
        m = jnp.max(s, axis=-1, keepdims=True)
        e = jnp.exp(s - m)
        denom = jnp.sum(e, axis=-1, keepdims=True)
        p = e * pl.reciprocal(denom, approx=True)      # EUP reciprocal, then multiply
        ctx.append(jnp.einsum("bqk,bkd->bqd", p.astype(cdt), v_h,
                              preferred_element_type=jnp.float32))         # (TB, S, hd)
    attn = jnp.concatenate(ctx, axis=-1).reshape(R, E)  # heads back onto the lane axis

    res1 = x + attn                                      # first residual connection

    # ---- MLP on LN(res1) ----
    ln2 = layer_norm(res1)
    h1 = jnp.dot(ln2.astype(cdt), w1_ref[...],
                 preferred_element_type=jnp.float32) + b1_ref[...]          # (R, H) f32
    # tanh-approximate GELU (tanh issues on the EUP slot).
    # TODO(synk): torch nn.GELU() default is erf-exact; tanh approximation deviates
    # by <~1e-3 absolute.
    h1 = 0.5 * h1 * (1.0 + jnp.tanh(0.7978845608028654 * (h1 + 0.044715 * h1 * h1 * h1)))
    mlp = jnp.dot(h1.astype(cdt), w2_ref[...],
                  preferred_element_type=jnp.float32) + b2_ref[...]
    # TODO(synk): nn.Dropout is identity here (inference semantics); no RNG dropout.

    o_ref[...] = (res1 + mlp).reshape(TB, S, E).astype(o_ref.dtype)


# ----------------------------- host-side sizing -------------------------------
def _step_vmem_bytes(tb, S, E, H, io_itemsize):
    """Rough per-grid-step VMEM footprint (f32 intermediates + double-buffered I/O)."""
    r = tb * S
    f32 = 4
    act = r * (E + 3 * E + 2 * E + H + E) * f32   # x / qkv / attn+res1 / h1 / out
    scores = tb * S * S * 2 * f32                 # one head's scores + exp live at a time
    io = 2 * 2 * r * E * io_itemsize              # double-buffered x and out blocks
    return act + scores + io


def _choose_block_batch(B, S, E, H, io_itemsize,
                        budget_bytes=20 * 2**20, min_steps=4):
    """VMEM-budget-derived batch rows per grid step (always a divisor of B)."""
    divisors = [d for d in range(1, B + 1) if B % d == 0]
    fitting = [d for d in divisors
               if _step_vmem_bytes(d, S, E, H, io_itemsize) <= budget_bytes]
    if not fitting:
        fitting = [1]
    tb = fitting[-1]
    # Prefer >= min_steps grid steps: restores DMA/compute pipelining on single-TC
    # chips (v5e/v6e) and gives each v7x TensorCore at least 2 steps.
    while B // tb < min_steps:
        smaller = [d for d in fitting if d < tb]
        if not smaller:
            break
        tb = smaller[-1]
    return tb


# ----------------------------- host wrapper ----------------------------------
def vit_image_transformer(x, params, *, num_heads, eps=1e-6,
                          compute_dtype=jnp.bfloat16, block_batch=None):
    """x: (B, S, E). params: dict of weights (Linear weights stored as (in, out))."""
    B, S, E = x.shape
    H = params["w1"].shape[1]
    assert E % num_heads == 0

    # Fuse Q/K/V into one (E, 3E) operand (one MXU pass, N=3E) and fold the
    # 1/sqrt(image_embedding) attention scale into the Q weight AND bias.
    scale = 1.0 / math.sqrt(E)          # torch: scores / sqrt(image_embedding)
    wqkv = jnp.concatenate([params["wq"] * scale, params["wk"], params["wv"]],
                           axis=1).astype(compute_dtype)
    bqkv = jnp.concatenate([params["bq"] * scale, params["bk"], params["bv"]],
                           axis=1).astype(jnp.float32)
    w1 = params["w1"].astype(compute_dtype)
    w2 = params["w2"].astype(compute_dtype)

    # VMEM-budgeted rows per step.
    io_itemsize = jnp.dtype(x.dtype).itemsize
    if block_batch is None:
        TB = _choose_block_batch(B, S, E, H, io_itemsize)
    else:
        TB = block_batch
    assert B % TB == 0, "block_batch must divide the batch size"
    grid = (B // TB,)

    # Explicit scoped-VMEM limit: resident weights (worst case double-buffered) +
    # per-step intermediates, floor 32 MiB, cap 56 MiB (v7x physical VMEM = 64 MiB).
    wbytes = ((E * 3 * E + E * H + H * E) * jnp.dtype(compute_dtype).itemsize
              + (3 * E + H + 3 * E) * 4)
    vmem_limit = int(min(max(2 * wbytes + 2 * _step_vmem_bytes(TB, S, E, H, io_itemsize),
                             32 * 2**20),
                         56 * 2**20))

    kernel = functools.partial(_vit_block_kernel, num_heads=num_heads, eps=eps)
    args = (x, params["ln_g"], params["ln_b"], wqkv, bqkv,
            w1, params["b1"], w2, params["b2"])

    def build(single_buffer_weights):
        # Grid-invariant operands (constant index_map) are DMA'd once and stay VMEM
        # resident; request single buffering so the resident copy is not duplicated.
        wkw = {"pipeline_mode": pl.Buffered(1)} if single_buffer_weights else {}

        def wspec(shape):
            nd = len(shape)
            return pl.BlockSpec(shape, lambda i, _nd=nd: (0,) * _nd, **wkw)

        return pl.pallas_call(
            kernel,
            out_shape=jax.ShapeDtypeStruct((B, S, E), x.dtype),
            grid_spec=pltpu.PrefetchScalarGridSpec(
                num_scalar_prefetch=0,
                grid=grid,
                in_specs=[
                    pl.BlockSpec((TB, S, E), lambda i: (i, 0, 0)),   # activations
                    wspec((1, E)), wspec((1, E)),                    # LN gamma, beta
                    wspec((E, 3 * E)), wspec((1, 3 * E)),            # fused Wqkv, bqkv
                    wspec((E, H)), wspec((1, H)),                    # W1, b1
                    wspec((H, E)), wspec((1, E)),                    # W2, b2
                ],
                out_specs=pl.BlockSpec((TB, S, E), lambda i: (i, 0, 0)),
            ),
            compiler_params=pltpu.CompilerParams(
                dimension_semantics=("parallel",),
                vmem_limit_bytes=vmem_limit,
            ),
        )

    try:
        return build(True)(*args)
    except Exception:
        # pl.Buffered(1) rejected by this jax/Mosaic version -> fall back to the
        # default (double-buffered) weight specs; correctness is unaffected.
        return build(False)(*args)


def init_params(key, embed, hidden):
    """Deterministic synthetic parameters. Linear weights stored as (in, out)."""
    ks = jax.random.split(key, 10)
    s_e = 1.0 / math.sqrt(embed)
    s_h = 1.0 / math.sqrt(hidden)
    return {
        "ln_g": jnp.ones((1, embed), jnp.float32),
        "ln_b": jnp.zeros((1, embed), jnp.float32),
        "wq": jax.random.normal(ks[0], (embed, embed), jnp.float32) * s_e,
        "bq": jax.random.normal(ks[1], (1, embed), jnp.float32) * 0.01,
        "wk": jax.random.normal(ks[2], (embed, embed), jnp.float32) * s_e,
        "bk": jax.random.normal(ks[3], (1, embed), jnp.float32) * 0.01,
        "wv": jax.random.normal(ks[4], (embed, embed), jnp.float32) * s_e,
        "bv": jax.random.normal(ks[5], (1, embed), jnp.float32) * 0.01,
        "w1": jax.random.normal(ks[6], (embed, hidden), jnp.float32) * s_e,
        "b1": jax.random.normal(ks[7], (1, hidden), jnp.float32) * 0.01,
        "w2": jax.random.normal(ks[8], (hidden, embed), jnp.float32) * s_h,
        "b2": jax.random.normal(ks[9], (1, embed), jnp.float32) * 0.01,
    }


# Pure-JAX reference with torch-faithful math (exact erf GELU, true-division softmax,
# 1/sqrt(image_embedding) score scale) for a sanity check.
def _reference(x, p, num_heads, eps):
    def ln(v):
        mu = v.mean(-1, keepdims=True)
        var = ((v - mu) ** 2).mean(-1, keepdims=True)
        return (v - mu) / jnp.sqrt(var + eps) * p["ln_g"][0] + p["ln_b"][0]

    B, S, E = x.shape
    nh = num_heads
    hd = E // nh
    l1 = ln(x)
    q = l1 @ p["wq"] + p["bq"][0]
    k = l1 @ p["wk"] + p["bk"][0]
    v = l1 @ p["wv"] + p["bv"][0]
    qh = q.reshape(B, S, nh, hd).transpose(0, 2, 1, 3)
    kh = k.reshape(B, S, nh, hd).transpose(0, 2, 1, 3)
    vh = v.reshape(B, S, nh, hd).transpose(0, 2, 1, 3)
    sc = jnp.einsum("bhqd,bhkd->bhqk", qh, kh) / math.sqrt(E)
    pr = jax.nn.softmax(sc, axis=-1)
    ao = jnp.einsum("bhqk,bhkd->bhqd", pr, vh).transpose(0, 2, 1, 3).reshape(B, S, E)
    r1 = x + ao
    l2 = ln(r1)
    h1 = l2 @ p["w1"] + p["b1"][0]
    h1 = 0.5 * h1 * (1.0 + jax.lax.erf(h1 / math.sqrt(2.0)))
    mlp = h1 @ p["w2"] + p["b2"][0]
    return r1 + mlp


if __name__ == "__main__":
    # Small config consistent with the module's forward:
    # image_embedding=32, attention_head=4, hidden_layer=64, eps=1e-6.
    B, S, E, NH, HID = 2, 8, 32, 4, 64
    EPS = 1e-6

    key = jax.random.PRNGKey(0)
    kx, kp = jax.random.split(key)
    x = jax.random.normal(kx, (B, S, E), jnp.float32)
    params = init_params(kp, E, HID)

    ref = jax.block_until_ready(_reference(x, params, NH, EPS))

    # Production configuration: bf16 MXU operands, f32 accumulation / element-wise math.
    out = jax.block_until_ready(
        vit_image_transformer(x, params, num_heads=NH, eps=EPS,
                              compute_dtype=jnp.bfloat16))
    assert out.shape == (B, S, E)
    err_bf16 = float(jnp.max(jnp.abs(out - ref)))
    assert err_bf16 < 1e-1, f"bf16 kernel mismatch vs reference: {err_bf16}"

    # f32 MXU operands: tighter structural parity check of the same kernel.
    out_f32 = jax.block_until_ready(
        vit_image_transformer(x, params, num_heads=NH, eps=EPS,
                              compute_dtype=jnp.float32))
    err_f32 = float(jnp.max(jnp.abs(out_f32 - ref)))
    assert err_f32 < 3e-2, f"f32 kernel mismatch vs reference: {err_f32}"

    print("KERNEL_OK")
</pallas_src>

<mosaic_0001>
module attributes {stable_mosaic.version = 11 : i64} {
  func.func @_vit_block_kernel(%arg0: i32, %arg1: memref<1x8x32xf32, #tpu.memory_space<vmem>>, %arg2: memref<1x32xf32, #tpu.memory_space<vmem>>, %arg3: memref<1x32xf32, #tpu.memory_space<vmem>>, %arg4: memref<32x96xbf16, #tpu.memory_space<vmem>>, %arg5: memref<1x96xf32, #tpu.memory_space<vmem>>, %arg6: memref<32x64xbf16, #tpu.memory_space<vmem>>, %arg7: memref<1x64xf32, #tpu.memory_space<vmem>>, %arg8: memref<64x32xbf16, #tpu.memory_space<vmem>>, %arg9: memref<1x32xf32, #tpu.memory_space<vmem>>, %arg10: memref<1x8x32xf32, #tpu.memory_space<vmem>>) attributes {dimension_semantics = [#tpu.dimension_semantics<parallel>], iteration_bounds = array<i64: 2>, scalar_prefetch = 0 : i64, scratch_operands = 0 : i64, tpu.core_type = #tpu.core_type<tc>, window_params = [{transform_indices = @transform_0, window_bounds = array<i64: 1, 8, 32>}, {pipeline_mode = #tpu.pipeline_mode<synchronous>, transform_indices = @transform_1, window_bounds = array<i64: 1, 32>}, {pipeline_mode = #tpu.pipeline_mode<synchronous>, transform_indices = @transform_2, window_bounds = array<i64: 1, 32>}, {pipeline_mode = #tpu.pipeline_mode<synchronous>, transform_indices = @transform_3, window_bounds = array<i64: 32, 96>}, {pipeline_mode = #tpu.pipeline_mode<synchronous>, transform_indices = @transform_4, window_bounds = array<i64: 1, 96>}, {pipeline_mode = #tpu.pipeline_mode<synchronous>, transform_indices = @transform_5, window_bounds = array<i64: 32, 64>}, {pipeline_mode = #tpu.pipeline_mode<synchronous>, transform_indices = @transform_6, window_bounds = array<i64: 1, 64>}, {pipeline_mode = #tpu.pipeline_mode<synchronous>, transform_indices = @transform_7, window_bounds = array<i64: 64, 32>}, {pipeline_mode = #tpu.pipeline_mode<synchronous>, transform_indices = @transform_8, window_bounds = array<i64: 1, 32>}, {transform_indices = @transform_9, window_bounds = array<i64: 1, 8, 32>}]} {
    %c0 = arith.constant 0 : index
    %c0_0 = arith.constant 0 : index
    %c0_1 = arith.constant 0 : index
    %0 = vector.load %arg1[%c0, %c0_0, %c0_1] : memref<1x8x32xf32, #tpu.memory_space<vmem>>, vector<1x8x32xf32>
    %1 = vector.shape_cast %0 : vector<1x8x32xf32> to vector<8x32xf32>
    %c0_2 = arith.constant 0 : index
    %c0_3 = arith.constant 0 : index
    %2 = vector.load %arg2[%c0_2, %c0_3] : memref<1x32xf32, #tpu.memory_space<vmem>>, vector<1x32xf32>
    %c0_4 = arith.constant 0 : index
    %c0_5 = arith.constant 0 : index
    %3 = vector.load %arg3[%c0_4, %c0_5] : memref<1x32xf32, #tpu.memory_space<vmem>>, vector<1x32xf32>
    %cst = arith.constant dense<0.000000e+00> : vector<8xf32>
    %4 = vector.multi_reduction <add>, %1, %cst [1] : vector<8x32xf32> to vector<8xf32>
    %5 = vector.shape_cast %4 : vector<8xf32> to vector<8x1xf32>
    %cst_6 = arith.constant 3.200000e+01 : f32
    %6 = vector.broadcast %cst_6 : f32 to vector<8x1xf32>
    %7 = arith.divf %5, %6 : vector<8x1xf32>
    %8 = vector.broadcast %7 : vector<8x1xf32> to vector<8x32xf32>
    %9 = arith.subf %1, %8 : vector<8x32xf32>
    %10 = arith.mulf %9, %9 : vector<8x32xf32>
    %cst_7 = arith.constant dense<0.000000e+00> : vector<8xf32>
    %11 = vector.multi_reduction <add>, %10, %cst_7 [1] : vector<8x32xf32> to vector<8xf32>
    %12 = vector.shape_cast %11 : vector<8xf32> to vector<8x1xf32>
    %cst_8 = arith.constant 3.200000e+01 : f32
    %13 = vector.broadcast %cst_8 : f32 to vector<8x1xf32>
    %14 = arith.divf %12, %13 : vector<8x1xf32>
    %cst_9 = arith.constant 9.99999997E-7 : f32
    %15 = vector.broadcast %cst_9 : f32 to vector<8x1xf32>
    %16 = arith.addf %14, %15 : vector<8x1xf32>
    %17 = math.rsqrt %16 : vector<8x1xf32>
    %18 = vector.broadcast %17 : vector<8x1xf32> to vector<8x32xf32>
    %19 = arith.mulf %9, %18 : vector<8x32xf32>
    %20 = vector.broadcast %2 : vector<1x32xf32> to vector<8x32xf32>
    %21 = arith.mulf %19, %20 : vector<8x32xf32>
    %22 = vector.broadcast %3 : vector<1x32xf32> to vector<8x32xf32>
    %23 = arith.addf %21, %22 : vector<8x32xf32>
    %24 = arith.truncf %23 : vector<8x32xf32> to vector<8x32xbf16>
    %c0_10 = arith.constant 0 : index
    %c0_11 = arith.constant 0 : index
    %25 = vector.load %arg4[%c0_10, %c0_11] : memref<32x96xbf16, #tpu.memory_space<vmem>>, vector<32x96xbf16>
    %cst_12 = arith.constant dense<0.000000e+00> : vector<8x96xf32>
    %26 = tpu.matmul %24, %25, %cst_12 {dimension_numbers = #tpu.dot_dimension_numbers<[1], [0], [0], [1], [0, 0, 1, 1], [], []>} : vector<8x32xbf16>, vector<32x96xbf16>, vector<8x96xf32> -> vector<8x96xf32>
    %c0_13 = arith.constant 0 : index
    %c0_14 = arith.constant 0 : index
    %27 = vector.load %arg5[%c0_13, %c0_14] : memref<1x96xf32, #tpu.memory_space<vmem>>, vector<1x96xf32>
    %28 = vector.broadcast %27 : vector<1x96xf32> to vector<8x96xf32>
    %29 = arith.addf %26, %28 : vector<8x96xf32>
    %30 = vector.shape_cast %29 : vector<8x96xf32> to vector<1x8x96xf32>
    %31 = vector.extract_strided_slice %30 {offsets = [0, 0, 0], sizes = [1, 8, 8], strides = [1, 1, 1]} : vector<1x8x96xf32> to vector<1x8x8xf32>
    %32 = arith.truncf %31 : vector<1x8x8xf32> to vector<1x8x8xbf16>
    %33 = vector.extract_strided_slice %30 {offsets = [0, 0, 32], sizes = [1, 8, 8], strides = [1, 1, 1]} : vector<1x8x96xf32> to vector<1x8x8xf32>
    %34 = arith.truncf %33 : vector<1x8x8xf32> to vector<1x8x8xbf16>
    %35 = vector.extract_strided_slice %30 {offsets = [0, 0, 64], sizes = [1, 8, 8], strides = [1, 1, 1]} : vector<1x8x96xf32> to vector<1x8x8xf32>
    %36 = arith.truncf %35 : vector<1x8x8xf32> to vector<1x8x8xbf16>
    "tpu.trace_start"() <{level = 10 : i32, message = "bqd,bkd->bqk"}> : () -> ()
    %cst_15 = arith.constant dense<0.000000e+00> : vector<1x8x8xf32>
    %37 = tpu.matmul %32, %34, %cst_15 {dimension_numbers = #tpu.dot_dimension_numbers<[2], [2], [1], [1], [0, 0, 0, 1, 1, 1], [0], [0]>} : vector<1x8x8xbf16>, vector<1x8x8xbf16>, vector<1x8x8xf32> -> vector<1x8x8xf32>
    "tpu.trace_stop"() : () -> ()
    %cst_16 = arith.constant dense<0xFF800000> : vector<1x8xf32>
    %38 = vector.multi_reduction <maximumf>, %37, %cst_16 [2] : vector<1x8x8xf32> to vector<1x8xf32>
    %39 = vector.shape_cast %38 : vector<1x8xf32> to vector<1x8x1xf32>
    %40 = vector.broadcast %39 : vector<1x8x1xf32> to vector<1x8x8xf32>
    %41 = arith.subf %37, %40 : vector<1x8x8xf32>
    %42 = math.exp %41 : vector<1x8x8xf32>
    %cst_17 = arith.constant dense<0.000000e+00> : vector<1x8xf32>
    %43 = vector.multi_reduction <add>, %42, %cst_17 [2] : vector<1x8x8xf32> to vector<1x8xf32>
    %44 = vector.shape_cast %43 : vector<1x8xf32> to vector<1x8x1xf32>
    %45 = tpu.reciprocal %44 {approx = true} : vector<1x8x1xf32> -> vector<1x8x1xf32>
    %46 = vector.broadcast %45 : vector<1x8x1xf32> to vector<1x8x8xf32>
    %47 = arith.mulf %42, %46 : vector<1x8x8xf32>
    %48 = arith.truncf %47 : vector<1x8x8xf32> to vector<1x8x8xbf16>
    "tpu.trace_start"() <{level = 10 : i32, message = "bqk,bkd->bqd"}> : () -> ()
    %cst_18 = arith.constant dense<0.000000e+00> : vector<1x8x8xf32>
    %49 = tpu.matmul %48, %36, %cst_18 {dimension_numbers = #tpu.dot_dimension_numbers<[2], [1], [1], [2], [0, 0, 0, 1, 1, 2], [0], [0]>} : vector<1x8x8xbf16>, vector<1x8x8xbf16>, vector<1x8x8xf32> -> vector<1x8x8xf32>
    "tpu.trace_stop"() : () -> ()
    %50 = vector.extract_strided_slice %30 {offsets = [0, 0, 8], sizes = [1, 8, 8], strides = [1, 1, 1]} : vector<1x8x96xf32> to vector<1x8x8xf32>
    %51 = arith.truncf %50 : vector<1x8x8xf32> to vector<1x8x8xbf16>
    %52 = vector.extract_strided_slice %30 {offsets = [0, 0, 40], sizes = [1, 8, 8], strides = [1, 1, 1]} : vector<1x8x96xf32> to vector<1x8x8xf32>
    %53 = arith.truncf %52 : vector<1x8x8xf32> to vector<1x8x8xbf16>
    %54 = vector.extract_strided_slice %30 {offsets = [0, 0, 72], sizes = [1, 8, 8], strides = [1, 1, 1]} : vector<1x8x96xf32> to vector<1x8x8xf32>
    %55 = arith.truncf %54 : vector<1x8x8xf32> to vector<1x8x8xbf16>
    "tpu.trace_start"() <{level = 10 : i32, message = "bqd,bkd->bqk"}> : () -> ()
    %cst_19 = arith.constant dense<0.000000e+00> : vector<1x8x8xf32>
    %56 = tpu.matmul %51, %53, %cst_19 {dimension_numbers = #tpu.dot_dimension_numbers<[2], [2], [1], [1], [0, 0, 0, 1, 1, 1], [0], [0]>} : vector<1x8x8xbf16>, vector<1x8x8xbf16>, vector<1x8x8xf32> -> vector<1x8x8xf32>
    "tpu.trace_stop"() : () -> ()
    %cst_20 = arith.constant dense<0xFF800000> : vector<1x8xf32>
    %57 = vector.multi_reduction <maximumf>, %56, %cst_20 [2] : vector<1x8x8xf32> to vector<1x8xf32>
    %58 = vector.shape_cast %57 : vector<1x8xf32> to vector<1x8x1xf32>
    %59 = vector.broadcast %58 : vector<1x8x1xf32> to vector<1x8x8xf32>
    %60 = arith.subf %56, %59 : vector<1x8x8xf32>
    %61 = math.exp %60 : vector<1x8x8xf32>
    %cst_21 = arith.constant dense<0.000000e+00> : vector<1x8xf32>
    %62 = vector.multi_reduction <add>, %61, %cst_21 [2] : vector<1x8x8xf32> to vector<1x8xf32>
    %63 = vector.shape_cast %62 : vector<1x8xf32> to vector<1x8x1xf32>
    %64 = tpu.reciprocal %63 {approx = true} : vector<1x8x1xf32> -> vector<1x8x1xf32>
    %65 = vector.broadcast %64 : vector<1x8x1xf32> to vector<1x8x8xf32>
    %66 = arith.mulf %61, %65 : vector<1x8x8xf32>
    %67 = arith.truncf %66 : vector<1x8x8xf32> to vector<1x8x8xbf16>
    "tpu.trace_start"() <{level = 10 : i32, message = "bqk,bkd->bqd"}> : () -> ()
    %cst_22 = arith.constant dense<0.000000e+00> : vector<1x8x8xf32>
    %68 = tpu.matmul %67, %55, %cst_22 {dimension_numbers = #tpu.dot_dimension_numbers<[2], [1], [1], [2], [0, 0, 0, 1, 1, 2], [0], [0]>} : vector<1x8x8xbf16>, vector<1x8x8xbf16>, vector<1x8x8xf32> -> vector<1x8x8xf32>
    "tpu.trace_stop"() : () -> ()
    %69 = vector.extract_strided_slice %30 {offsets = [0, 0, 16], sizes = [1, 8, 8], strides = [1, 1, 1]} : vector<1x8x96xf32> to vector<1x8x8xf32>
    %70 = arith.truncf %69 : vector<1x8x8xf32> to vector<1x8x8xbf16>
    %71 = vector.extract_strided_slice %30 {offsets = [0, 0, 48], sizes = [1, 8, 8], strides = [1, 1, 1]} : vector<1x8x96xf32> to vector<1x8x8xf32>
    %72 = arith.truncf %71 : vector<1x8x8xf32> to vector<1x8x8xbf16>
    %73 = vector.extract_strided_slice %30 {offsets = [0, 0, 80], sizes = [1, 8, 8], strides = [1, 1, 1]} : vector<1x8x96xf32> to vector<1x8x8xf32>
    %74 = arith.truncf %73 : vector<1x8x8xf32> to vector<1x8x8xbf16>
    "tpu.trace_start"() <{level = 10 : i32, message = "bqd,bkd->bqk"}> : () -> ()
    %cst_23 = arith.constant dense<0.000000e+00> : vector<1x8x8xf32>
    %75 = tpu.matmul %70, %72, %cst_23 {dimension_numbers = #tpu.dot_dimension_numbers<[2], [2], [1], [1], [0, 0, 0, 1, 1, 1], [0], [0]>} : vector<1x8x8xbf16>, vector<1x8x8xbf16>, vector<1x8x8xf32> -> vector<1x8x8xf32>
    "tpu.trace_stop"() : () -> ()
    %cst_24 = arith.constant dense<0xFF800000> : vector<1x8xf32>
    %76 = vector.multi_reduction <maximumf>, %75, %cst_24 [2] : vector<1x8x8xf32> to vector<1x8xf32>
    %77 = vector.shape_cast %76 : vector<1x8xf32> to vector<1x8x1xf32>
    %78 = vector.broadcast %77 : vector<1x8x1xf32> to vector<1x8x8xf32>
    %79 = arith.subf %75, %78 : vector<1x8x8xf32>
    %80 = math.exp %79 : vector<1x8x8xf32>
    %cst_25 = arith.constant dense<0.000000e+00> : vector<1x8xf32>
    %81 = vector.multi_reduction <add>, %80, %cst_25 [2] : vector<1x8x8xf32> to vector<1x8xf32>
    %82 = vector.shape_cast %81 : vector<1x8xf32> to vector<1x8x1xf32>
    %83 = tpu.reciprocal %82 {approx = true} : vector<1x8x1xf32> -> vector<1x8x1xf32>
    %84 = vector.broadcast %83 : vector<1x8x1xf32> to vector<1x8x8xf32>
    %85 = arith.mulf %80, %84 : vector<1x8x8xf32>
    %86 = arith.truncf %85 : vector<1x8x8xf32> to vector<1x8x8xbf16>
    "tpu.trace_start"() <{level = 10 : i32, message = "bqk,bkd->bqd"}> : () -> ()
    %cst_26 = arith.constant dense<0.000000e+00> : vector<1x8x8xf32>
    %87 = tpu.matmul %86, %74, %cst_26 {dimension_numbers = #tpu.dot_dimension_numbers<[2], [1], [1], [2], [0, 0, 0, 1, 1, 2], [0], [0]>} : vector<1x8x8xbf16>, vector<1x8x8xbf16>, vector<1x8x8xf32> -> vector<1x8x8xf32>
    "tpu.trace_stop"() : () -> ()
    %88 = vector.extract_strided_slice %30 {offsets = [0, 0, 24], sizes = [1, 8, 8], strides = [1, 1, 1]} : vector<1x8x96xf32> to vector<1x8x8xf32>
    %89 = arith.truncf %88 : vector<1x8x8xf32> to vector<1x8x8xbf16>
    %90 = vector.extract_strided_slice %30 {offsets = [0, 0, 56], sizes = [1, 8, 8], strides = [1, 1, 1]} : vector<1x8x96xf32> to vector<1x8x8xf32>
    %91 = arith.truncf %90 : vector<1x8x8xf32> to vector<1x8x8xbf16>
    %92 = vector.extract_strided_slice %30 {offsets = [0, 0, 88], sizes = [1, 8, 8], strides = [1, 1, 1]} : vector<1x8x96xf32> to vector<1x8x8xf32>
    %93 = arith.truncf %92 : vector<1x8x8xf32> to vector<1x8x8xbf16>
    "tpu.trace_start"() <{level = 10 : i32, message = "bqd,bkd->bqk"}> : () -> ()
    %cst_27 = arith.constant dense<0.000000e+00> : vector<1x8x8xf32>
    %94 = tpu.matmul %89, %91, %cst_27 {dimension_numbers = #tpu.dot_dimension_numbers<[2], [2], [1], [1], [0, 0, 0, 1, 1, 1], [0], [0]>} : vector<1x8x8xbf16>, vector<1x8x8xbf16>, vector<1x8x8xf32> -> vector<1x8x8xf32>
    "tpu.trace_stop"() : () -> ()
    %cst_28 = arith.constant dense<0xFF800000> : vector<1x8xf32>
    %95 = vector.multi_reduction <maximumf>, %94, %cst_28 [2] : vector<1x8x8xf32> to vector<1x8xf32>
    %96 = vector.shape_cast %95 : vector<1x8xf32> to vector<1x8x1xf32>
    %97 = vector.broadcast %96 : vector<1x8x1xf32> to vector<1x8x8xf32>
    %98 = arith.subf %94, %97 : vector<1x8x8xf32>
    %99 = math.exp %98 : vector<1x8x8xf32>
    %cst_29 = arith.constant dense<0.000000e+00> : vector<1x8xf32>
    %100 = vector.multi_reduction <add>, %99, %cst_29 [2] : vector<1x8x8xf32> to vector<1x8xf32>
    %101 = vector.shape_cast %100 : vector<1x8xf32> to vector<1x8x1xf32>
    %102 = tpu.reciprocal %101 {approx = true} : vector<1x8x1xf32> -> vector<1x8x1xf32>
    %103 = vector.broadcast %102 : vector<1x8x1xf32> to vector<1x8x8xf32>
    %104 = arith.mulf %99, %103 : vector<1x8x8xf32>
    %105 = arith.truncf %104 : vector<1x8x8xf32> to vector<1x8x8xbf16>
    "tpu.trace_start"() <{level = 10 : i32, message = "bqk,bkd->bqd"}> : () -> ()
    %cst_30 = arith.constant dense<0.000000e+00> : vector<1x8x8xf32>
    %106 = tpu.matmul %105, %93, %cst_30 {dimension_numbers = #tpu.dot_dimension_numbers<[2], [1], [1], [2], [0, 0, 0, 1, 1, 2], [0], [0]>} : vector<1x8x8xbf16>, vector<1x8x8xbf16>, vector<1x8x8xf32> -> vector<1x8x8xf32>
    "tpu.trace_stop"() : () -> ()
    %107 = tpu.concatenate %49, %68, %87, %106 in 2 : vector<1x8x8xf32>, vector<1x8x8xf32>, vector<1x8x8xf32>, vector<1x8x8xf32> -> vector<1x8x32xf32>
    %108 = vector.shape_cast %107 : vector<1x8x32xf32> to vector<8x32xf32>
    %109 = arith.addf %1, %108 : vector<8x32xf32>
    %cst_31 = arith.constant dense<0.000000e+00> : vector<8xf32>
    %110 = vector.multi_reduction <add>, %109, %cst_31 [1] : vector<8x32xf32> to vector<8xf32>
    %111 = vector.shape_cast %110 : vector<8xf32> to vector<8x1xf32>
    %cst_32 = arith.constant 3.200000e+01 : f32
    %112 = vector.broadcast %cst_32 : f32 to vector<8x1xf32>
    %113 = arith.divf %111, %112 : vector<8x1xf32>
    %114 = vector.broadcast %113 : vector<8x1xf32> to vector<8x32xf32>
    %115 = arith.subf %109, %114 : vector<8x32xf32>
    %116 = arith.mulf %115, %115 : vector<8x32xf32>
    %cst_33 = arith.constant dense<0.000000e+00> : vector<8xf32>
    %117 = vector.multi_reduction <add>, %116, %cst_33 [1] : vector<8x32xf32> to vector<8xf32>
    %118 = vector.shape_cast %117 : vector<8xf32> to vector<8x1xf32>
    %cst_34 = arith.constant 3.200000e+01 : f32
    %119 = vector.broadcast %cst_34 : f32 to vector<8x1xf32>
    %120 = arith.divf %118, %119 : vector<8x1xf32>
    %cst_35 = arith.constant 9.99999997E-7 : f32
    %121 = vector.broadcast %cst_35 : f32 to vector<8x1xf32>
    %122 = arith.addf %120, %121 : vector<8x1xf32>
    %123 = math.rsqrt %122 : vector<8x1xf32>
    %124 = vector.broadcast %123 : vector<8x1xf32> to vector<8x32xf32>
    %125 = arith.mulf %115, %124 : vector<8x32xf32>
    %126 = vector.broadcast %2 : vector<1x32xf32> to vector<8x32xf32>
    %127 = arith.mulf %125, %126 : vector<8x32xf32>
    %128 = vector.broadcast %3 : vector<1x32xf32> to vector<8x32xf32>
    %129 = arith.addf %127, %128 : vector<8x32xf32>
    %130 = arith.truncf %129 : vector<8x32xf32> to vector<8x32xbf16>
    %c0_36 = arith.constant 0 : index
    %c0_37 = arith.constant 0 : index
    %131 = vector.load %arg6[%c0_36, %c0_37] : memref<32x64xbf16, #tpu.memory_space<vmem>>, vector<32x64xbf16>
    %cst_38 = arith.constant dense<0.000000e+00> : vector<8x64xf32>
    %132 = tpu.matmul %130, %131, %cst_38 {dimension_numbers = #tpu.dot_dimension_numbers<[1], [0], [0], [1], [0, 0, 1, 1], [], []>} : vector<8x32xbf16>, vector<32x64xbf16>, vector<8x64xf32> -> vector<8x64xf32>
    %c0_39 = arith.constant 0 : index
    %c0_40 = arith.constant 0 : index
    %133 = vector.load %arg7[%c0_39, %c0_40] : memref<1x64xf32, #tpu.memory_space<vmem>>, vector<1x64xf32>
    %134 = vector.broadcast %133 : vector<1x64xf32> to vector<8x64xf32>
    %135 = arith.addf %132, %134 : vector<8x64xf32>
    %cst_41 = arith.constant 5.000000e-01 : f32
    %136 = vector.broadcast %cst_41 : f32 to vector<8x64xf32>
    %137 = arith.mulf %136, %135 : vector<8x64xf32>
    %cst_42 = arith.constant 4.471500e-02 : f32
    %138 = vector.broadcast %cst_42 : f32 to vector<8x64xf32>
    %139 = arith.mulf %138, %135 : vector<8x64xf32>
    %140 = arith.mulf %139, %135 : vector<8x64xf32>
    %141 = arith.mulf %140, %135 : vector<8x64xf32>
    %142 = arith.addf %135, %141 : vector<8x64xf32>
    %cst_43 = arith.constant 0.797884583 : f32
    %143 = vector.broadcast %cst_43 : f32 to vector<8x64xf32>
    %144 = arith.mulf %143, %142 : vector<8x64xf32>
    %145 = math.tanh %144 : vector<8x64xf32>
    %cst_44 = arith.constant 1.000000e+00 : f32
    %146 = vector.broadcast %cst_44 : f32 to vector<8x64xf32>
    %147 = arith.addf %146, %145 : vector<8x64xf32>
    %148 = arith.mulf %137, %147 : vector<8x64xf32>
    %149 = arith.truncf %148 : vector<8x64xf32> to vector<8x64xbf16>
    %c0_45 = arith.constant 0 : index
    %c0_46 = arith.constant 0 : index
    %150 = vector.load %arg8[%c0_45, %c0_46] : memref<64x32xbf16, #tpu.memory_space<vmem>>, vector<64x32xbf16>
    %cst_47 = arith.constant dense<0.000000e+00> : vector<8x32xf32>
    %151 = tpu.matmul %149, %150, %cst_47 {dimension_numbers = #tpu.dot_dimension_numbers<[1], [0], [0], [1], [0, 0, 1, 1], [], []>} : vector<8x64xbf16>, vector<64x32xbf16>, vector<8x32xf32> -> vector<8x32xf32>
    %c0_48 = arith.constant 0 : index
    %c0_49 = arith.constant 0 : index
    %152 = vector.load %arg9[%c0_48, %c0_49] : memref<1x32xf32, #tpu.memory_space<vmem>>, vector<1x32xf32>
    %153 = vector.broadcast %152 : vector<1x32xf32> to vector<8x32xf32>
    %154 = arith.addf %151, %153 : vector<8x32xf32>
    %155 = arith.addf %109, %154 : vector<8x32xf32>
    %156 = vector.shape_cast %155 : vector<8x32xf32> to vector<1x8x32xf32>
    %c0_50 = arith.constant 0 : index
    %c0_51 = arith.constant 0 : index
    %c0_52 = arith.constant 0 : index
    %157 = vector.load %arg10[%c0_50, %c0_51, %c0_52] : memref<1x8x32xf32, #tpu.memory_space<vmem>>, vector<1x8x32xf32>
    tpu.vector_store %arg10[%c0_50, %c0_51, %c0_52], %156 {strides = array<i32>} : memref<1x8x32xf32, #tpu.memory_space<vmem>>, vector<1x8x32xf32>,
    return
  }
  func.func @transform_0(%arg0: i32) -> (i32, i32, i32) {
    %c0_i32 = arith.constant 0 : i32
    %c0_i32_0 = arith.constant 0 : i32
    %c0_i32_1 = arith.constant 0 : i32
    return %arg0, %c0_i32, %c0_i32_0 : i32, i32, i32
  }
  func.func @transform_1(%arg0: i32) -> (i32, i32) {
    %c0_i32 = arith.constant 0 : i32
    %c0_i32_0 = arith.constant 0 : i32
    %c0_i32_1 = arith.constant 0 : i32
    return %c0_i32, %c0_i32_0 : i32, i32
  }
  func.func @transform_2(%arg0: i32) -> (i32, i32) {
    %c0_i32 = arith.constant 0 : i32
    %c0_i32_0 = arith.constant 0 : i32
    %c0_i32_1 = arith.constant 0 : i32
    return %c0_i32, %c0_i32_0 : i32, i32
  }
  func.func @transform_3(%arg0: i32) -> (i32, i32) {
    %c0_i32 = arith.constant 0 : i32
    %c0_i32_0 = arith.constant 0 : i32
    %c0_i32_1 = arith.constant 0 : i32
    return %c0_i32, %c0_i32_0 : i32, i32
  }
  func.func @transform_4(%arg0: i32) -> (i32, i32) {
    %c0_i32 = arith.constant 0 : i32
    %c0_i32_0 = arith.constant 0 : i32
    %c0_i32_1 = arith.constant 0 : i32
    return %c0_i32, %c0_i32_0 : i32, i32
  }
  func.func @transform_5(%arg0: i32) -> (i32, i32) {
    %c0_i32 = arith.constant 0 : i32
    %c0_i32_0 = arith.constant 0 : i32
    %c0_i32_1 = arith.constant 0 : i32
    return %c0_i32, %c0_i32_0 : i32, i32
  }
  func.func @transform_6(%arg0: i32) -> (i32, i32) {
    %c0_i32 = arith.constant 0 : i32
    %c0_i32_0 = arith.constant 0 : i32
    %c0_i32_1 = arith.constant 0 : i32
    return %c0_i32, %c0_i32_0 : i32, i32
  }
  func.func @transform_7(%arg0: i32) -> (i32, i32) {
    %c0_i32 = arith.constant 0 : i32
    %c0_i32_0 = arith.constant 0 : i32
    %c0_i32_1 = arith.constant 0 : i32
    return %c0_i32, %c0_i32_0 : i32, i32
  }
  func.func @transform_8(%arg0: i32) -> (i32, i32) {
    %c0_i32 = arith.constant 0 : i32
    %c0_i32_0 = arith.constant 0 : i32
    %c0_i32_1 = arith.constant 0 : i32
    return %c0_i32, %c0_i32_0 : i32, i32
  }
  func.func @transform_9(%arg0: i32) -> (i32, i32, i32) {
    %c0_i32 = arith.constant 0 : i32
    %c0_i32_0 = arith.constant 0 : i32
    %c0_i32_1 = arith.constant 0 : i32
    return %arg0, %c0_i32, %c0_i32_0 : i32, i32, i32
  }
}

module attributes {stable_mosaic.version = 11 : i64} {
  func.func @_vit_block_kernel(%arg0: i32, %arg1: memref<1x8x32xf32, #tpu.memory_space<vmem>>, %arg2: memref<1x32xf32, #tpu.memory_space<vmem>>, %arg3: memref<1x32xf32, #tpu.memory_space<vmem>>, %arg4: memref<32x96xbf16, #tpu.memory_space<vmem>>, %arg5: memref<1x96xf32, #tpu.memory_space<vmem>>, %arg6: memref<32x64xbf16, #tpu.memory_space<vmem>>, %arg7: memref<1x64xf32, #tpu.memory_space<vmem>>, %arg8: memref<64x32xbf16, #tpu.memory_space<vmem>>, %arg9: memref<1x32xf32, #tpu.memory_space<vmem>>, %arg10: memref<1x8x32xf32, #tpu.memory_space<vmem>>) attributes {dimension_semantics = [#tpu.dimension_semantics<parallel>], iteration_bounds = array<i64: 2>, scalar_prefetch = 0 : i64, scratch_operands = 0 : i64, tpu.core_type = #tpu.core_type<tc>, window_params = [{transform_indices = @transform_0, window_bounds = array<i64: 1, 8, 32>}, {pipeline_mode = #tpu.pipeline_mode<synchronous>, transform_indices = @transform_1, window_bounds = array<i64: 1, 32>}, {pipeline_mode = #tpu.pipeline_mode<synchronous>, transform_indices = @transform_2, window_bounds = array<i64: 1, 32>}, {pipeline_mode = #tpu.pipeline_mode<synchronous>, transform_indices = @transform_3, window_bounds = array<i64: 32, 96>}, {pipeline_mode = #tpu.pipeline_mode<synchronous>, transform_indices = @transform_4, window_bounds = array<i64: 1, 96>}, {pipeline_mode = #tpu.pipeline_mode<synchronous>, transform_indices = @transform_5, window_bounds = array<i64: 32, 64>}, {pipeline_mode = #tpu.pipeline_mode<synchronous>, transform_indices = @transform_6, window_bounds = array<i64: 1, 64>}, {pipeline_mode = #tpu.pipeline_mode<synchronous>, transform_indices = @transform_7, window_bounds = array<i64: 64, 32>}, {pipeline_mode = #tpu.pipeline_mode<synchronous>, transform_indices = @transform_8, window_bounds = array<i64: 1, 32>}, {transform_indices = @transform_9, window_bounds = array<i64: 1, 8, 32>}]} {
    %c0 = arith.constant 0 : index
    %c0_0 = arith.constant 0 : index
    %c0_1 = arith.constant 0 : index
    %0 = vector.load %arg1[%c0, %c0_0, %c0_1] : memref<1x8x32xf32, #tpu.memory_space<vmem>>, vector<1x8x32xf32>
    %1 = vector.shape_cast %0 : vector<1x8x32xf32> to vector<8x32xf32>
    %c0_2 = arith.constant 0 : index
    %c0_3 = arith.constant 0 : index
    %2 = vector.load %arg2[%c0_2, %c0_3] : memref<1x32xf32, #tpu.memory_space<vmem>>, vector<1x32xf32>
    %c0_4 = arith.constant 0 : index
    %c0_5 = arith.constant 0 : index
    %3 = vector.load %arg3[%c0_4, %c0_5] : memref<1x32xf32, #tpu.memory_space<vmem>>, vector<1x32xf32>
    %cst = arith.constant dense<0.000000e+00> : vector<8xf32>
    %4 = vector.multi_reduction <add>, %1, %cst [1] : vector<8x32xf32> to vector<8xf32>
    %5 = vector.shape_cast %4 : vector<8xf32> to vector<8x1xf32>
    %cst_6 = arith.constant 3.200000e+01 : f32
    %6 = vector.broadcast %cst_6 : f32 to vector<8x1xf32>
    %7 = arith.divf %5, %6 : vector<8x1xf32>
    %8 = vector.broadcast %7 : vector<8x1xf32> to vector<8x32xf32>
    %9 = arith.subf %1, %8 : vector<8x32xf32>
    %10 = arith.mulf %9, %9 : vector<8x32xf32>
    %cst_7 = arith.constant dense<0.000000e+00> : vector<8xf32>
    %11 = vector.multi_reduction <add>, %10, %cst_7 [1] : vector<8x32xf32> to vector<8xf32>
    %12 = vector.shape_cast %11 : vector<8xf32> to vector<8x1xf32>
    %cst_8 = arith.constant 3.200000e+01 : f32
    %13 = vector.broadcast %cst_8 : f32 to vector<8x1xf32>
    %14 = arith.divf %12, %13 : vector<8x1xf32>
    %cst_9 = arith.constant 9.99999997E-7 : f32
    %15 = vector.broadcast %cst_9 : f32 to vector<8x1xf32>
    %16 = arith.addf %14, %15 : vector<8x1xf32>
    %17 = math.rsqrt %16 : vector<8x1xf32>
    %18 = vector.broadcast %17 : vector<8x1xf32> to vector<8x32xf32>
    %19 = arith.mulf %9, %18 : vector<8x32xf32>
    %20 = vector.broadcast %2 : vector<1x32xf32> to vector<8x32xf32>
    %21 = arith.mulf %19, %20 : vector<8x32xf32>
    %22 = vector.broadcast %3 : vector<1x32xf32> to vector<8x32xf32>
    %23 = arith.addf %21, %22 : vector<8x32xf32>
    %24 = arith.truncf %23 : vector<8x32xf32> to vector<8x32xbf16>
    %c0_10 = arith.constant 0 : index
    %c0_11 = arith.constant 0 : index
    %25 = vector.load %arg4[%c0_10, %c0_11] : memref<32x96xbf16, #tpu.memory_space<vmem>>, vector<32x96xbf16>
    %cst_12 = arith.constant dense<0.000000e+00> : vector<8x96xf32>
    %26 = tpu.matmul %24, %25, %cst_12 {dimension_numbers = #tpu.dot_dimension_numbers<[1], [0], [0], [1], [0, 0, 1, 1], [], []>} : vector<8x32xbf16>, vector<32x96xbf16>, vector<8x96xf32> -> vector<8x96xf32>
    %c0_13 = arith.constant 0 : index
    %c0_14 = arith.constant 0 : index
    %27 = vector.load %arg5[%c0_13, %c0_14] : memref<1x96xf32, #tpu.memory_space<vmem>>, vector<1x96xf32>
    %28 = vector.broadcast %27 : vector<1x96xf32> to vector<8x96xf32>
    %29 = arith.addf %26, %28 : vector<8x96xf32>
    %30 = vector.shape_cast %29 : vector<8x96xf32> to vector<1x8x96xf32>
    %31 = vector.extract_strided_slice %30 {offsets = [0, 0, 0], sizes = [1, 8, 8], strides = [1, 1, 1]} : vector<1x8x96xf32> to vector<1x8x8xf32>
    %32 = arith.truncf %31 : vector<1x8x8xf32> to vector<1x8x8xbf16>
    %33 = vector.extract_strided_slice %30 {offsets = [0, 0, 32], sizes = [1, 8, 8], strides = [1, 1, 1]} : vector<1x8x96xf32> to vector<1x8x8xf32>
    %34 = arith.truncf %33 : vector<1x8x8xf32> to vector<1x8x8xbf16>
    %35 = vector.extract_strided_slice %30 {offsets = [0, 0, 64], sizes = [1, 8, 8], strides = [1, 1, 1]} : vector<1x8x96xf32> to vector<1x8x8xf32>
    %36 = arith.truncf %35 : vector<1x8x8xf32> to vector<1x8x8xbf16>
    "tpu.trace_start"() <{level = 10 : i32, message = "bqd,bkd->bqk"}> : () -> ()
    %cst_15 = arith.constant dense<0.000000e+00> : vector<1x8x8xf32>
    %37 = tpu.matmul %32, %34, %cst_15 {dimension_numbers = #tpu.dot_dimension_numbers<[2], [2], [1], [1], [0, 0, 0, 1, 1, 1], [0], [0]>} : vector<1x8x8xbf16>, vector<1x8x8xbf16>, vector<1x8x8xf32> -> vector<1x8x8xf32>
    "tpu.trace_stop"() : () -> ()
    %cst_16 = arith.constant dense<0xFF800000> : vector<1x8xf32>
    %38 = vector.multi_reduction <maximumf>, %37, %cst_16 [2] : vector<1x8x8xf32> to vector<1x8xf32>
    %39 = vector.shape_cast %38 : vector<1x8xf32> to vector<1x8x1xf32>
    %40 = vector.broadcast %39 : vector<1x8x1xf32> to vector<1x8x8xf32>
    %41 = arith.subf %37, %40 : vector<1x8x8xf32>
    %42 = math.exp %41 : vector<1x8x8xf32>
    %cst_17 = arith.constant dense<0.000000e+00> : vector<1x8xf32>
    %43 = vector.multi_reduction <add>, %42, %cst_17 [2] : vector<1x8x8xf32> to vector<1x8xf32>
    %44 = vector.shape_cast %43 : vector<1x8xf32> to vector<1x8x1xf32>
    %45 = tpu.reciprocal %44 {approx = true} : vector<1x8x1xf32> -> vector<1x8x1xf32>
    %46 = vector.broadcast %45 : vector<1x8x1xf32> to vector<1x8x8xf32>
    %47 = arith.mulf %42, %46 : vector<1x8x8xf32>
    %48 = arith.truncf %47 : vector<1x8x8xf32> to vector<1x8x8xbf16>
    "tpu.trace_start"() <{level = 10 : i32, message = "bqk,bkd->bqd"}> : () -> ()
    %cst_18 = arith.constant dense<0.000000e+00> : vector<1x8x8xf32>
    %49 = tpu.matmul %48, %36, %cst_18 {dimension_numbers = #tpu.dot_dimension_numbers<[2], [1], [1], [2], [0, 0, 0, 1, 1, 2], [0], [0]>} : vector<1x8x8xbf16>, vector<1x8x8xbf16>, vector<1x8x8xf32> -> vector<1x8x8xf32>
    "tpu.trace_stop"() : () -> ()
    %50 = vector.extract_strided_slice %30 {offsets = [0, 0, 8], sizes = [1, 8, 8], strides = [1, 1, 1]} : vector<1x8x96xf32> to vector<1x8x8xf32>
    %51 = arith.truncf %50 : vector<1x8x8xf32> to vector<1x8x8xbf16>
    %52 = vector.extract_strided_slice %30 {offsets = [0, 0, 40], sizes = [1, 8, 8], strides = [1, 1, 1]} : vector<1x8x96xf32> to vector<1x8x8xf32>
    %53 = arith.truncf %52 : vector<1x8x8xf32> to vector<1x8x8xbf16>
    %54 = vector.extract_strided_slice %30 {offsets = [0, 0, 72], sizes = [1, 8, 8], strides = [1, 1, 1]} : vector<1x8x96xf32> to vector<1x8x8xf32>
    %55 = arith.truncf %54 : vector<1x8x8xf32> to vector<1x8x8xbf16>
    "tpu.trace_start"() <{level = 10 : i32, message = "bqd,bkd->bqk"}> : () -> ()
    %cst_19 = arith.constant dense<0.000000e+00> : vector<1x8x8xf32>
    %56 = tpu.matmul %51, %53, %cst_19 {dimension_numbers = #tpu.dot_dimension_numbers<[2], [2], [1], [1], [0, 0, 0, 1, 1, 1], [0], [0]>} : vector<1x8x8xbf16>, vector<1x8x8xbf16>, vector<1x8x8xf32> -> vector<1x8x8xf32>
    "tpu.trace_stop"() : () -> ()
    %cst_20 = arith.constant dense<0xFF800000> : vector<1x8xf32>
    %57 = vector.multi_reduction <maximumf>, %56, %cst_20 [2] : vector<1x8x8xf32> to vector<1x8xf32>
    %58 = vector.shape_cast %57 : vector<1x8xf32> to vector<1x8x1xf32>
    %59 = vector.broadcast %58 : vector<1x8x1xf32> to vector<1x8x8xf32>
    %60 = arith.subf %56, %59 : vector<1x8x8xf32>
    %61 = math.exp %60 : vector<1x8x8xf32>
    %cst_21 = arith.constant dense<0.000000e+00> : vector<1x8xf32>
    %62 = vector.multi_reduction <add>, %61, %cst_21 [2] : vector<1x8x8xf32> to vector<1x8xf32>
    %63 = vector.shape_cast %62 : vector<1x8xf32> to vector<1x8x1xf32>
    %64 = tpu.reciprocal %63 {approx = true} : vector<1x8x1xf32> -> vector<1x8x1xf32>
    %65 = vector.broadcast %64 : vector<1x8x1xf32> to vector<1x8x8xf32>
    %66 = arith.mulf %61, %65 : vector<1x8x8xf32>
    %67 = arith.truncf %66 : vector<1x8x8xf32> to vector<1x8x8xbf16>
    "tpu.trace_start"() <{level = 10 : i32, message = "bqk,bkd->bqd"}> : () -> ()
    %cst_22 = arith.constant dense<0.000000e+00> : vector<1x8x8xf32>
    %68 = tpu.matmul %67, %55, %cst_22 {dimension_numbers = #tpu.dot_dimension_numbers<[2], [1], [1], [2], [0, 0, 0, 1, 1, 2], [0], [0]>} : vector<1x8x8xbf16>, vector<1x8x8xbf16>, vector<1x8x8xf32> -> vector<1x8x8xf32>
    "tpu.trace_stop"() : () -> ()
    %69 = vector.extract_strided_slice %30 {offsets = [0, 0, 16], sizes = [1, 8, 8], strides = [1, 1, 1]} : vector<1x8x96xf32> to vector<1x8x8xf32>
    %70 = arith.truncf %69 : vector<1x8x8xf32> to vector<1x8x8xbf16>
    %71 = vector.extract_strided_slice %30 {offsets = [0, 0, 48], sizes = [1, 8, 8], strides = [1, 1, 1]} : vector<1x8x96xf32> to vector<1x8x8xf32>
    %72 = arith.truncf %71 : vector<1x8x8xf32> to vector<1x8x8xbf16>
    %73 = vector.extract_strided_slice %30 {offsets = [0, 0, 80], sizes = [1, 8, 8], strides = [1, 1, 1]} : vector<1x8x96xf32> to vector<1x8x8xf32>
    %74 = arith.truncf %73 : vector<1x8x8xf32> to vector<1x8x8xbf16>
    "tpu.trace_start"() <{level = 10 : i32, message = "bqd,bkd->bqk"}> : () -> ()
    %cst_23 = arith.constant dense<0.000000e+00> : vector<1x8x8xf32>
    %75 = tpu.matmul %70, %72, %cst_23 {dimension_numbers = #tpu.dot_dimension_numbers<[2], [2], [1], [1], [0, 0, 0, 1, 1, 1], [0], [0]>} : vector<1x8x8xbf16>, vector<1x8x8xbf16>, vector<1x8x8xf32> -> vector<1x8x8xf32>
    "tpu.trace_stop"() : () -> ()
    %cst_24 = arith.constant dense<0xFF800000> : vector<1x8xf32>
    %76 = vector.multi_reduction <maximumf>, %75, %cst_24 [2] : vector<1x8x8xf32> to vector<1x8xf32>
    %77 = vector.shape_cast %76 : vector<1x8xf32> to vector<1x8x1xf32>
    %78 = vector.broadcast %77 : vector<1x8x1xf32> to vector<1x8x8xf32>
    %79 = arith.subf %75, %78 : vector<1x8x8xf32>
    %80 = math.exp %79 : vector<1x8x8xf32>
    %cst_25 = arith.constant dense<0.000000e+00> : vector<1x8xf32>
    %81 = vector.multi_reduction <add>, %80, %cst_25 [2] : vector<1x8x8xf32> to vector<1x8xf32>
    %82 = vector.shape_cast %81 : vector<1x8xf32> to vector<1x8x1xf32>
    %83 = tpu.reciprocal %82 {approx = true} : vector<1x8x1xf32> -> vector<1x8x1xf32>
    %84 = vector.broadcast %83 : vector<1x8x1xf32> to vector<1x8x8xf32>
    %85 = arith.mulf %80, %84 : vector<1x8x8xf32>
    %86 = arith.truncf %85 : vector<1x8x8xf32> to vector<1x8x8xbf16>
    "tpu.trace_start"() <{level = 10 : i32, message = "bqk,bkd->bqd"}> : () -> ()
    %cst_26 = arith.constant dense<0.000000e+00> : vector<1x8x8xf32>
    %87 = tpu.matmul %86, %74, %cst_26 {dimension_numbers = #tpu.dot_dimension_numbers<[2], [1], [1], [2], [0, 0, 0, 1, 1, 2], [0], [0]>} : vector<1x8x8xbf16>, vector<1x8x8xbf16>, vector<1x8x8xf32> -> vector<1x8x8xf32>
    "tpu.trace_stop"() : () -> ()
    %88 = vector.extract_strided_slice %30 {offsets = [0, 0, 24], sizes = [1, 8, 8], strides = [1, 1, 1]} : vector<1x8x96xf32> to vector<1x8x8xf32>
    %89 = arith.truncf %88 : vector<1x8x8xf32> to vector<1x8x8xbf16>
    %90 = vector.extract_strided_slice %30 {offsets = [0, 0, 56], sizes = [1, 8, 8], strides = [1, 1, 1]} : vector<1x8x96xf32> to vector<1x8x8xf32>
    %91 = arith.truncf %90 : vector<1x8x8xf32> to vector<1x8x8xbf16>
    %92 = vector.extract_strided_slice %30 {offsets = [0, 0, 88], sizes = [1, 8, 8], strides = [1, 1, 1]} : vector<1x8x96xf32> to vector<1x8x8xf32>
    %93 = arith.truncf %92 : vector<1x8x8xf32> to vector<1x8x8xbf16>
    "tpu.trace_start"() <{level = 10 : i32, message = "bqd,bkd->bqk"}> : () -> ()
    %cst_27 = arith.constant dense<0.000000e+00> : vector<1x8x8xf32>
    %94 = tpu.matmul %89, %91, %cst_27 {dimension_numbers = #tpu.dot_dimension_numbers<[2], [2], [1], [1], [0, 0, 0, 1, 1, 1], [0], [0]>} : vector<1x8x8xbf16>, vector<1x8x8xbf16>, vector<1x8x8xf32> -> vector<1x8x8xf32>
    "tpu.trace_stop"() : () -> ()
    %cst_28 = arith.constant dense<0xFF800000> : vector<1x8xf32>
    %95 = vector.multi_reduction <maximumf>, %94, %cst_28 [2] : vector<1x8x8xf32> to vector<1x8xf32>
    %96 = vector.shape_cast %95 : vector<1x8xf32> to vector<1x8x1xf32>
    %97 = vector.broadcast %96 : vector<1x8x1xf32> to vector<1x8x8xf32>
    %98 = arith.subf %94, %97 : vector<1x8x8xf32>
    %99 = math.exp %98 : vector<1x8x8xf32>
    %cst_29 = arith.constant dense<0.000000e+00> : vector<1x8xf32>
    %100 = vector.multi_reduction <add>, %99, %cst_29 [2] : vector<1x8x8xf32> to vector<1x8xf32>
    %101 = vector.shape_cast %100 : vector<1x8xf32> to vector<1x8x1xf32>
    %102 = tpu.reciprocal %101 {approx = true} : vector<1x8x1xf32> -> vector<1x8x1xf32>
    %103 = vector.broadcast %102 : vector<1x8x1xf32> to vector<1x8x8xf32>
    %104 = arith.mulf %99, %103 : vector<1x8x8xf32>
    %105 = arith.truncf %104 : vector<1x8x8xf32> to vector<1x8x8xbf16>
    "tpu.trace_start"() <{level = 10 : i32, message = "bqk,bkd->bqd"}> : () -> ()
    %cst_30 = arith.constant dense<0.000000e+00> : vector<1x8x8xf32>
    %106 = tpu.matmul %105, %93, %cst_30 {dimension_numbers = #tpu.dot_dimension_numbers<[2], [1], [1], [2], [0, 0, 0, 1, 1, 2], [0], [0]>} : vector<1x8x8xbf16>, vector<1x8x8xbf16>, vector<1x8x8xf32> -> vector<1x8x8xf32>
    "tpu.trace_stop"() : () -> ()
    %107 = tpu.concatenate %49, %68, %87, %106 in 2 : vector<1x8x8xf32>, vector<1x8x8xf32>, vector<1x8x8xf32>, vector<1x8x8xf32> -> vector<1x8x32xf32>
    %108 = vector.shape_cast %107 : vector<1x8x32xf32> to vector<8x32xf32>
    %109 = arith.addf %1, %108 : vector<8x32xf32>
    %cst_31 = arith.constant dense<0.000000e+00> : vector<8xf32>
    %110 = vector.multi_reduction <add>, %109, %cst_31 [1] : vector<8x32xf32> to vector<8xf32>
    %111 = vector.shape_cast %110 : vector<8xf32> to vector<8x1xf32>
    %cst_32 = arith.constant 3.200000e+01 : f32
    %112 = vector.broadcast %cst_32 : f32 to vector<8x1xf32>
    %113 = arith.divf %111, %112 : vector<8x1xf32>
    %114 = vector.broadcast %113 : vector<8x1xf32> to vector<8x32xf32>
    %115 = arith.subf %109, %114 : vector<8x32xf32>
    %116 = arith.mulf %115, %115 : vector<8x32xf32>
    %cst_33 = arith.constant dense<0.000000e+00> : vector<8xf32>
    %117 = vector.multi_reduction <add>, %116, %cst_33 [1] : vector<8x32xf32> to vector<8xf32>
    %118 = vector.shape_cast %117 : vector<8xf32> to vector<8x1xf32>
    %cst_34 = arith.constant 3.200000e+01 : f32
    %119 = vector.broadcast %cst_34 : f32 to vector<8x1xf32>
    %120 = arith.divf %118, %119 : vector<8x1xf32>
    %cst_35 = arith.constant 9.99999997E-7 : f32
    %121 = vector.broadcast %cst_35 : f32 to vector<8x1xf32>
    %122 = arith.addf %120, %121 : vector<8x1xf32>
    %123 = math.rsqrt %122 : vector<8x1xf32>
    %124 = vector.broadcast %123 : vector<8x1xf32> to vector<8x32xf32>
    %125 = arith.mulf %115, %124 : vector<8x32xf32>
    %126 = vector.broadcast %2 : vector<1x32xf32> to vector<8x32xf32>
    %127 = arith.mulf %125, %126 : vector<8x32xf32>
    %128 = vector.broadcast %3 : vector<1x32xf32> to vector<8x32xf32>
    %129 = arith.addf %127, %128 : vector<8x32xf32>
    %130 = arith.truncf %129 : vector<8x32xf32> to vector<8x32xbf16>
    %c0_36 = arith.constant 0 : index
    %c0_37 = arith.constant 0 : index
    %131 = vector.load %arg6[%c0_36, %c0_37] : memref<32x64xbf16, #tpu.memory_space<vmem>>, vector<32x64xbf16>
    %cst_38 = arith.constant dense<0.000000e+00> : vector<8x64xf32>
    %132 = tpu.matmul %130, %131, %cst_38 {dimension_numbers = #tpu.dot_dimension_numbers<[1], [0], [0], [1], [0, 0, 1, 1], [], []>} : vector<8x32xbf16>, vector<32x64xbf16>, vector<8x64xf32> -> vector<8x64xf32>
    %c0_39 = arith.constant 0 : index
    %c0_40 = arith.constant 0 : index
    %133 = vector.load %arg7[%c0_39, %c0_40] : memref<1x64xf32, #tpu.memory_space<vmem>>, vector<1x64xf32>
    %134 = vector.broadcast %133 : vector<1x64xf32> to vector<8x64xf32>
    %135 = arith.addf %132, %134 : vector<8x64xf32>
    %cst_41 = arith.constant 5.000000e-01 : f32
    %136 = vector.broadcast %cst_41 : f32 to vector<8x64xf32>
    %137 = arith.mulf %136, %135 : vector<8x64xf32>
    %cst_42 = arith.constant 4.471500e-02 : f32
    %138 = vector.broadcast %cst_42 : f32 to vector<8x64xf32>
    %139 = arith.mulf %138, %135 : vector<8x64xf32>
    %140 = arith.mulf %139, %135 : vector<8x64xf32>
    %141 = arith.mulf %140, %135 : vector<8x64xf32>
    %142 = arith.addf %135, %141 : vector<8x64xf32>
    %cst_43 = arith.constant 0.797884583 : f32
    %143 = vector.broadcast %cst_43 : f32 to vector<8x64xf32>
    %144 = arith.mulf %143, %142 : vector<8x64xf32>
    %145 = math.tanh %144 : vector<8x64xf32>
    %cst_44 = arith.constant 1.000000e+00 : f32
    %146 = vector.broadcast %cst_44 : f32 to vector<8x64xf32>
    %147 = arith.addf %146, %145 : vector<8x64xf32>
    %148 = arith.mulf %137, %147 : vector<8x64xf32>
    %149 = arith.truncf %148 : vector<8x64xf32> to vector<8x64xbf16>
    %c0_45 = arith.constant 0 : index
    %c0_46 = arith.constant 0 : index
    %150 = vector.load %arg8[%c0_45, %c0_46] : memref<64x32xbf16, #tpu.memory_space<vmem>>, vector<64x32xbf16>
    %cst_47 = arith.constant dense<0.000000e+00> : vector<8x32xf32>
    %151 = tpu.matmul %149, %150, %cst_47 {dimension_numbers = #tpu.dot_dimension_numbers<[1], [0], [0], [1], [0, 0, 1, 1], [], []>} : vector<8x64xbf16>, vector<64x32xbf16>, vector<8x32xf32> -> vector<8x32xf32>
    %c0_48 = arith.constant 0 : index
    %c0_49 = arith.constant 0 : index
    %152 = vector.load %arg9[%c0_48, %c0_49] : memref<1x32xf32, #tpu.memory_space<vmem>>, vector<1x32xf32>
    %153 = vector.broadcast %152 : vector<1x32xf32> to vector<8x32xf32>
    %154 = arith.addf %151, %153 : vector<8x32xf32>
    %155 = arith.addf %109, %154 : vector<8x32xf32>
    %156 = vector.shape_cast %155 : vector<8x32xf32> to vector<1x8x32xf32>
    %c0_50 = arith.constant 0 : index
    %c0_51 = arith.constant 0 : index
    %c0_52 = arith.constant 0 : index
    %157 = vector.load %arg10[%c0_50, %c0_51, %c0_52] : memref<1x8x32xf32, #tpu.memory_space<vmem>>, vector<1x8x32xf32>
    tpu.vector_store %arg10[%c0_50, %c0_51, %c0_52], %156 {strides = array<i32>} : memref<1x8x32xf32, #tpu.memory_space<vmem>>, vector<1x8x32xf32>,
    return
  }
  func.func @transform_0(%arg0: i32) -> (i32, i32, i32) {
    %c0_i32 = arith.constant 0 : i32
    %c0_i32_0 = arith.constant 0 : i32
    %c0_i32_1 = arith.constant 0 : i32
    return %arg0, %c0_i32, %c0_i32_0 : i32, i32, i32
  }
  func.func @transform_1(%arg0: i32) -> (i32, i32) {
    %c0_i32 = arith.constant 0 : i32
    %c0_i32_0 = arith.constant 0 : i32
    %c0_i32_1 = arith.constant 0 : i32
    return %c0_i32, %c0_i32_0 : i32, i32
  }
  func.func @transform_2(%arg0: i32) -> (i32, i32) {
    %c0_i32 = arith.constant 0 : i32
    %c0_i32_0 = arith.constant 0 : i32
    %c0_i32_1 = arith.constant 0 : i32
    return %c0_i32, %c0_i32_0 : i32, i32
  }
  func.func @transform_3(%arg0: i32) -> (i32, i32) {
    %c0_i32 = arith.constant 0 : i32
    %c0_i32_0 = arith.constant 0 : i32
    %c0_i32_1 = arith.constant 0 : i32
    return %c0_i32, %c0_i32_0 : i32, i32
  }
  func.func @transform_4(%arg0: i32) -> (i32, i32) {
    %c0_i32 = arith.constant 0 : i32
    %c0_i32_0 = arith.constant 0 : i32
    %c0_i32_1 = arith.constant 0 : i32
    return %c0_i32, %c0_i32_0 : i32, i32
  }
  func.func @transform_5(%arg0: i32) -> (i32, i32) {
    %c0_i32 = arith.constant 0 : i32
    %c0_i32_0 = arith.constant 0 : i32
    %c0_i32_1 = arith.constant 0 : i32
    return %c0_i32, %c0_i32_0 : i32, i32
  }
  func.func @transform_6(%arg0: i32) -> (i32, i32) {
    %c0_i32 = arith.constant 0 : i32
    %c0_i32_0 = arith.constant 0 : i32
    %c0_i32_1 = arith.constant 0 : i32
    return %c0_i32, %c0_i32_0 : i32, i32
  }
  func.func @transform_7(%arg0: i32) -> (i32, i32) {
    %c0_i32 = arith.constant 0 : i32
    %c0_i32_0 = arith.constant 0 : i32
    %c0_i32_1 = arith.constant 0 : i32
    return %c0_i32, %c0_i32_0 : i32, i32
  }
  func.func @transform_8(%arg0: i32) -> (i32, i32) {
    %c0_i32 = arith.constant 0 : i32
    %c0_i32_0 = arith.constant 0 : i32
    %c0_i32_1 = arith.constant 0 : i32
    return %c0_i32, %c0_i32_0 : i32, i32
  }
  func.func @transform_9(%arg0: i32) -> (i32, i32, i32) {
    %c0_i32 = arith.constant 0 : i32
    %c0_i32_0 = arith.constant 0 : i32
    %c0_i32_1 = arith.constant 0 : i32
    return %arg0, %c0_i32, %c0_i32_0 : i32, i32, i32
  }
}

</mosaic_0001>

<llo_original>
// kernel: tpu_custom_call.1
$region0: #{tpu_custom_call.1}
  #allocation0 [shape = 'u32[]', space=smem, size = 0x4, offset = 0x4, fixed_abs, tag = 'smem constant byte address 0x4 - core index']
  #allocation1 [shape = 'u32[144,128]{1,0:T(1,128)}', space=vmem, size = 0x12000, scoped, tag = 'internal scratch']
  %s0 = inlined_call_operand.vmem [shape: f32[2,8,32], index: 0, kind: input, shape index: {}]
  %s1 = inlined_call_operand.vmem [shape: f32[1,32], index: 1, kind: input, shape index: {}]
  %s2 = inlined_call_operand.vmem [shape: f32[1,32], index: 2, kind: input, shape index: {}]
  %s3 = inlined_call_operand.vmem [shape: bf16[32,96], index: 3, kind: input, shape index: {}]
  %s4 = inlined_call_operand.vmem [shape: f32[1,96], index: 4, kind: input, shape index: {}]
  %s5 = inlined_call_operand.vmem [shape: bf16[32,64], index: 5, kind: input, shape index: {}]
  %s6 = inlined_call_operand.vmem [shape: f32[1,64], index: 6, kind: input, shape index: {}]
  %s7 = inlined_call_operand.vmem [shape: bf16[64,32], index: 7, kind: input, shape index: {}]
  %s8 = inlined_call_operand.vmem [shape: f32[1,32], index: 8, kind: input, shape index: {}]
  %s9 = inlined_call_operand.hbm [shape: f32[2,8,32], index: 9, kind: output, shape index: {}]
  %s10 = sld [smem:[#allocation0]]
  $region69: #{tpu_custom_call.1} parent=0
    _
  %s12 = ssub.s32 1, %s10
  %s13 = scalar_select 0, %s12, %s10
  $region1: #{tpu_custom_call.1} parent=0
    #allocation2 [shape = 'u8[8192]{0}', space=vmem, size = 0x2000, scoped, tag = 'output window, operand 0']
    #allocation3 [shape = 's32[2]{0}', space=sflag, size = 0x8, scoped, tag = 'scoped memory for tpu_custom_call.1']
    %14 = vsyncpa [#allocation3], 0
    %s15 = scalar_lea.sflag [#allocation3], 1
    %16 = vsyncpa %s15, 0
    loop: start=0, step=1, limit=4
    $region2: #{tpu_custom_call.1} parent=1 // loop_pre_header
      _
    $region3: #{tpu_custom_call.1} parent=1 // loop_header
      %s18 = sphi 0, %s22
      %p19 = scmp.ge.s32.totalorder %s18, 4
      %s28 = sphi 0, %s30
      %s31 = sphi 0, %s28
      %s32 = sphi 0, %s31
      %s48 = sphi 0, %s32
      %s52 = sphi 0, %s52
      %s54 = sphi 0, %s52
      %s55 = sphi 0, %s54
      %s69 = sphi 0, %s55
      %s73 = sphi 0, %s73
      %s75 = sphi 0, %s73
      %s76 = sphi 0, %s75
      %s90 = sphi 0, %s76
      %s94 = sphi 0, %s94
      %s96 = sphi 0, %s94
      %s97 = sphi 0, %s96
      %s111 = sphi 0, %s97
      %s115 = sphi 0, %s115
      %s117 = sphi 0, %s115
      %s118 = sphi 0, %s117
      %s132 = sphi 0, %s118
      %s136 = sphi 0, %s136
      %s138 = sphi 0, %s136
      %s139 = sphi 0, %s138
      %s153 = sphi 0, %s139
      %s157 = sphi 0, %s157
      %s159 = sphi 0, %s157
      %s160 = sphi 0, %s159
      %s174 = sphi 0, %s160
      %s178 = sphi 0, %s178
      %s180 = sphi 0, %s178
      %s181 = sphi 0, %s180
      %s195 = sphi 0, %s181
      %s199 = sphi 0, %s199
      %s201 = sphi 0, %s199
      %s202 = sphi 0, %s201
      %s216 = sphi 0, %s202
      %s222 = sphi 0, %s224
      %s225 = sphi 0, %s222
      %s226 = sphi 0, %s225
      %s242 = sphi 0, %s226
    $region4: #{tpu_custom_call.1} parent=1 // loop_header_branch
      %21 = sbr.rel (%p19) target = $region8
    $region5: #{tpu_custom_call.1} parent=1 // loop_body
      %s23 = ssub.s32 %s18, 1
      %s24 = ssub.s32 %s18, 2
      %s25 = sadd.s32 %s18, 1
      %s26 = ssub.s32 %s18, %s25
      %p27 = scmp.eq.s32.totalorder %s26, 0
      %s29 = sadd.s32 %s28, 1
      %s30 = scalar_select %p27, %s28, %s29
      %p33 = pneg %p27
      %p34 = scmp.eq.s32.totalorder %s18, 1
      %p35 = por %p33, %p34
      %p36 = scmp.ne.s32.totalorder %s28, %s31
      %p37 = scmp.eq.s32.totalorder %s18, 0
      %p38 = por %p36, %p37
      %p39 = scmp.ne.s32.totalorder %s28, %s31
      %p40 = scmp.eq.s32.totalorder %s23, 1
      %p41 = por %p39, %p40
      %p42 = scmp.ne.s32.totalorder %s31, %s32
      %p43 = scmp.eq.s32.totalorder %s23, 0
      %p44 = por %p42, %p43
      %p45 = scmp.ne.s32.totalorder %s31, %s32
      %p46 = scmp.eq.s32.totalorder %s24, 1
      %p47 = por %p45, %p46
      %p49 = scmp.ne.s32.totalorder %s32, %s48
      %p50 = scmp.eq.s32.totalorder %s24, 0
      %p51 = por %p49, %p50
      %s53 = sadd.s32 %s52, 1
      %p56 = scmp.eq.s32.totalorder %s18, 1
      %p57 = scmp.ne.s32.totalorder %s52, %s54
      %p58 = scmp.eq.s32.totalorder %s18, 0
      %p59 = por %p57, %p58
      %p60 = scmp.ne.s32.totalorder %s52, %s54
      %p61 = scmp.eq.s32.totalorder %s23, 1
      %p62 = por %p60, %p61
      %p63 = scmp.ne.s32.totalorder %s54, %s55
      %p64 = scmp.eq.s32.totalorder %s23, 0
      %p65 = por %p63, %p64
      %p66 = scmp.ne.s32.totalorder %s54, %s55
      %p67 = scmp.eq.s32.totalorder %s24, 1
      %p68 = por %p66, %p67
      %p70 = scmp.ne.s32.totalorder %s55, %s69
      %p71 = scmp.eq.s32.totalorder %s24, 0
      %p72 = por %p70, %p71
      %s74 = sadd.s32 %s73, 1
      %p77 = scmp.eq.s32.totalorder %s18, 1
      %p78 = scmp.ne.s32.totalorder %s73, %s75
      %p79 = scmp.eq.s32.totalorder %s18, 0
      %p80 = por %p78, %p79
      %p81 = scmp.ne.s32.totalorder %s73, %s75
      %p82 = scmp.eq.s32.totalorder %s23, 1
      %p83 = por %p81, %p82
      %p84 = scmp.ne.s32.totalorder %s75, %s76
      %p85 = scmp.eq.s32.totalorder %s23, 0
      %p86 = por %p84, %p85
      %p87 = scmp.ne.s32.totalorder %s75, %s76
      %p88 = scmp.eq.s32.totalorder %s24, 1
      %p89 = por %p87, %p88
      %p91 = scmp.ne.s32.totalorder %s76, %s90
      %p92 = scmp.eq.s32.totalorder %s24, 0
      %p93 = por %p91, %p92
      %s95 = sadd.s32 %s94, 1
      %p98 = scmp.eq.s32.totalorder %s18, 1
      %p99 = scmp.ne.s32.totalorder %s94, %s96
      %p100 = scmp.eq.s32.totalorder %s18, 0
      %p101 = por %p99, %p100
      %p102 = scmp.ne.s32.totalorder %s94, %s96
      %p103 = scmp.eq.s32.totalorder %s23, 1
      %p104 = por %p102, %p103
      %p105 = scmp.ne.s32.totalorder %s96, %s97
      %p106 = scmp.eq.s32.totalorder %s23, 0
      %p107 = por %p105, %p106
      %p108 = scmp.ne.s32.totalorder %s96, %s97
      %p109 = scmp.eq.s32.totalorder %s24, 1
      %p110 = por %p108, %p109
      %p112 = scmp.ne.s32.totalorder %s97, %s111
      %p113 = scmp.eq.s32.totalorder %s24, 0
      %p114 = por %p112, %p113
      %s116 = sadd.s32 %s115, 1
      %p119 = scmp.eq.s32.totalorder %s18, 1
      %p120 = scmp.ne.s32.totalorder %s115, %s117
      %p121 = scmp.eq.s32.totalorder %s18, 0
      %p122 = por %p120, %p121
      %p123 = scmp.ne.s32.totalorder %s115, %s117
      %p124 = scmp.eq.s32.totalorder %s23, 1
      %p125 = por %p123, %p124
      %p126 = scmp.ne.s32.totalorder %s117, %s118
      %p127 = scmp.eq.s32.totalorder %s23, 0
      %p128 = por %p126, %p127
      %p129 = scmp.ne.s32.totalorder %s117, %s118
      %p130 = scmp.eq.s32.totalorder %s24, 1
      %p131 = por %p129, %p130
      %p133 = scmp.ne.s32.totalorder %s118, %s132
      %p134 = scmp.eq.s32.totalorder %s24, 0
      %p135 = por %p133, %p134
      %s137 = sadd.s32 %s136, 1
      %p140 = scmp.eq.s32.totalorder %s18, 1
      %p141 = scmp.ne.s32.totalorder %s136, %s138
      %p142 = scmp.eq.s32.totalorder %s18, 0
      %p143 = por %p141, %p142
      %p144 = scmp.ne.s32.totalorder %s136, %s138
      %p145 = scmp.eq.s32.totalorder %s23, 1
      %p146 = por %p144, %p145
      %p147 = scmp.ne.s32.totalorder %s138, %s139
      %p148 = scmp.eq.s32.totalorder %s23, 0
      %p149 = por %p147, %p148
      %p150 = scmp.ne.s32.totalorder %s138, %s139
      %p151 = scmp.eq.s32.totalorder %s24, 1
      %p152 = por %p150, %p151
      %p154 = scmp.ne.s32.totalorder %s139, %s153
      %p155 = scmp.eq.s32.totalorder %s24, 0
      %p156 = por %p154, %p155
      %s158 = sadd.s32 %s157, 1
      %p161 = scmp.eq.s32.totalorder %s18, 1
      %p162 = scmp.ne.s32.totalorder %s157, %s159
      %p163 = scmp.eq.s32.totalorder %s18, 0
      %p164 = por %p162, %p163
      %p165 = scmp.ne.s32.totalorder %s157, %s159
      %p166 = scmp.eq.s32.totalorder %s23, 1
      %p167 = por %p165, %p166
      %p168 = scmp.ne.s32.totalorder %s159, %s160
      %p169 = scmp.eq.s32.totalorder %s23, 0
      %p170 = por %p168, %p169
      %p171 = scmp.ne.s32.totalorder %s159, %s160
      %p172 = scmp.eq.s32.totalorder %s24, 1
      %p173 = por %p171, %p172
      %p175 = scmp.ne.s32.totalorder %s160, %s174
      %p176 = scmp.eq.s32.totalorder %s24, 0
      %p177 = por %p175, %p176
      %s179 = sadd.s32 %s178, 1
      %p182 = scmp.eq.s32.totalorder %s18, 1
      %p183 = scmp.ne.s32.totalorder %s178, %s180
      %p184 = scmp.eq.s32.totalorder %s18, 0
      %p185 = por %p183, %p184
      %p186 = scmp.ne.s32.totalorder %s178, %s180
      %p187 = scmp.eq.s32.totalorder %s23, 1
      %p188 = por %p186, %p187
      %p189 = scmp.ne.s32.totalorder %s180, %s181
      %p190 = scmp.eq.s32.totalorder %s23, 0
      %p191 = por %p189, %p190
      %p192 = scmp.ne.s32.totalorder %s180, %s181
      %p193 = scmp.eq.s32.totalorder %s24, 1
      %p194 = por %p192, %p193
      %p196 = scmp.ne.s32.totalorder %s181, %s195
      %p197 = scmp.eq.s32.totalorder %s24, 0
      %p198 = por %p196, %p197
      %s200 = sadd.s32 %s199, 1
      %p203 = scmp.eq.s32.totalorder %s18, 1
      %p204 = scmp.ne.s32.totalorder %s199, %s201
      %p205 = scmp.eq.s32.totalorder %s18, 0
      %p206 = por %p204, %p205
      %p207 = scmp.ne.s32.totalorder %s199, %s201
      %p208 = scmp.eq.s32.totalorder %s23, 1
      %p209 = por %p207, %p208
      %p210 = scmp.ne.s32.totalorder %s201, %s202
      %p211 = scmp.eq.s32.totalorder %s23, 0
      %p212 = por %p210, %p211
      %p213 = scmp.ne.s32.totalorder %s201, %s202
      %p214 = scmp.eq.s32.totalorder %s24, 1
      %p215 = por %p213, %p214
      %p217 = scmp.ne.s32.totalorder %s202, %s216
      %p218 = scmp.eq.s32.totalorder %s24, 0
      %p219 = por %p217, %p218
      %s220 = ssub.s32 %s18, %s25
      %p221 = scmp.eq.s32.totalorder %s220, 0
      %s223 = sadd.s32 %s222, 1
      %s224 = scalar_select %p221, %s222, %s223
      %p227 = pneg %p221
      %p228 = scmp.eq.s32.totalorder %s18, 1
      %p229 = por %p227, %p228
      %p230 = scmp.ne.s32.totalorder %s222, %s225
      %p231 = scmp.eq.s32.totalorder %s18, 0
      %p232 = por %p230, %p231
      %p233 = scmp.ne.s32.totalorder %s222, %s225
      %p234 = scmp.eq.s32.totalorder %s23, 1
      %p235 = por %p233, %p234
      %p236 = scmp.ne.s32.totalorder %s225, %s226
      %p237 = scmp.eq.s32.totalorder %s23, 0
      %p238 = por %p236, %p237
      %p239 = scmp.ne.s32.totalorder %s225, %s226
      %p240 = scmp.eq.s32.totalorder %s24, 1
      %p241 = por %p239, %p240
      %p243 = scmp.ne.s32.totalorder %s226, %s242
      %p244 = scmp.eq.s32.totalorder %s24, 0
      %p245 = por %p243, %p244
      %p246 = scmp.le.s32.totalorder 1, %s18
      %p247 = scmp.lt.s32.totalorder %s18, 3
      %p248 = pnand %p246, %p247
      %p249 = pneg %p248
      // Predicated region
      $region9: #{tpu_custom_call.1} parent=5 // pred_check
        _
      $region10: #{tpu_custom_call.1} parent=5 // pred_check_branch
        %251 = sbr.rel (%p248) target = $region12
      $region11: #{tpu_custom_call.1} parent=5 // pred_region
        %s252 = ssub.s32 %s18, 1
        // Predicated region
        $region13: #{tpu_custom_call.1} parent=11 // pred_check
          %p253 = pneg %p65
        $region14: #{tpu_custom_call.1} parent=11 // pred_check_branch
          %255 = sbr.rel (%p253) target = $region16
        $region15: #{tpu_custom_call.1} parent=11 // pred_region
          _
        $region16: #{tpu_custom_call.1} parent=11 // pred_fallthru
          _
        // Predicated region
        $region17: #{tpu_custom_call.1} parent=11 // pred_check
          %p256 = pneg %p86
        $region18: #{tpu_custom_call.1} parent=11 // pred_check_branch
          %258 = sbr.rel (%p256) target = $region20
        $region19: #{tpu_custom_call.1} parent=11 // pred_region
          _
        $region20: #{tpu_custom_call.1} parent=11 // pred_fallthru
          _
        // Predicated region
        $region21: #{tpu_custom_call.1} parent=11 // pred_check
          %p259 = pneg %p107
        $region22: #{tpu_custom_call.1} parent=11 // pred_check_branch
          %261 = sbr.rel (%p259) target = $region24
        $region23: #{tpu_custom_call.1} parent=11 // pred_region
          _
        $region24: #{tpu_custom_call.1} parent=11 // pred_fallthru
          _
        // Predicated region
        $region25: #{tpu_custom_call.1} parent=11 // pred_check
          %p262 = pneg %p128
        $region26: #{tpu_custom_call.1} parent=11 // pred_check_branch
          %264 = sbr.rel (%p262) target = $region28
        $region27: #{tpu_custom_call.1} parent=11 // pred_region
          _
        $region28: #{tpu_custom_call.1} parent=11 // pred_fallthru
          _
        // Predicated region
        $region29: #{tpu_custom_call.1} parent=11 // pred_check
          %p265 = pneg %p149
        $region30: #{tpu_custom_call.1} parent=11 // pred_check_branch
          %267 = sbr.rel (%p265) target = $region32
        $region31: #{tpu_custom_call.1} parent=11 // pred_region
          _
        $region32: #{tpu_custom_call.1} parent=11 // pred_fallthru
          _
        // Predicated region
        $region33: #{tpu_custom_call.1} parent=11 // pred_check
          %p268 = pneg %p170
        $region34: #{tpu_custom_call.1} parent=11 // pred_check_branch
          %270 = sbr.rel (%p268) target = $region36
        $region35: #{tpu_custom_call.1} parent=11 // pred_region
          _
        $region36: #{tpu_custom_call.1} parent=11 // pred_fallthru
          _
        // Predicated region
        $region37: #{tpu_custom_call.1} parent=11 // pred_check
          %p271 = pneg %p191
        $region38: #{tpu_custom_call.1} parent=11 // pred_check_branch
          %273 = sbr.rel (%p271) target = $region40
        $region39: #{tpu_custom_call.1} parent=11 // pred_region
          _
        $region40: #{tpu_custom_call.1} parent=11 // pred_fallthru
          _
        // Predicated region
        $region41: #{tpu_custom_call.1} parent=11 // pred_check
          %p274 = pneg %p212
        $region42: #{tpu_custom_call.1} parent=11 // pred_check_branch
          %276 = sbr.rel (%p274) target = $region44
        $region43: #{tpu_custom_call.1} parent=11 // pred_region
          _
        $region44: #{tpu_custom_call.1} parent=11 // pred_fallthru
          _
      $region12: #{tpu_custom_call.1} parent=5 // pred_fallthru
        _
      %p277 = scmp.lt.s32.totalorder %s18, 2
      // Predicated region
      $region45: #{tpu_custom_call.1} parent=5 // pred_check
        %p278 = pneg %p277
      $region46: #{tpu_custom_call.1} parent=5 // pred_check_branch
        %280 = sbr.rel (%p278) target = $region48
      $region47: #{tpu_custom_call.1} parent=5 // pred_region
        // Predicated region
        $region49: #{tpu_custom_call.1} parent=47 // pred_check
          %p281 = pneg %p38
        $region50: #{tpu_custom_call.1} parent=47 // pred_check_branch
          %283 = sbr.rel (%p281) target = $region52
        $region51: #{tpu_custom_call.1} parent=47 // pred_region
          %p284 = scmp.lt.s32.totalorder %s18, 1
          %s285 = scalar_select %p284, %s18, 1
          %s286 = smul.addr %s285, 8
          %s287 = scalar_lea.vmem %s0, %s286
        $region52: #{tpu_custom_call.1} parent=47 // pred_fallthru
          _
      $region48: #{tpu_custom_call.1} parent=5 // pred_fallthru
        _
      %p288 = scmp.le.s32.totalorder 1, %s18
      %p289 = scmp.lt.s32.totalorder %s18, 3
      %p290 = pnand %p288, %p289
      %p291 = pneg %p290
      // Predicated region
      $region53: #{tpu_custom_call.1} parent=5 // pred_check
        _
      $region54: #{tpu_custom_call.1} parent=5 // pred_check_branch
        %293 = sbr.rel (%p290) target = $region56
      $region55: #{tpu_custom_call.1} parent=5 // pred_region
        %s294 = ssub.s32 %s18, 1
        %p295 = scmp.lt.s32.totalorder %s23, 1
        %s296 = scalar_select %p295, %s23, 1
        %s297 = smul.addr %s296, 8
        %s298 = scalar_lea.vmem %s0, %s297
        %p299 = pneg %p44
        %p300 = pneg %p41
        %p301 = pneg %p65
        %p302 = pneg %p62
        %p303 = pneg %p86
        %p304 = pneg %p83
        %p305 = pneg %p107
        %p306 = pneg %p104
        %p307 = pneg %p128
        %p308 = pneg %p125
        %p309 = pneg %p149
        %p310 = pneg %p146
        %p311 = pneg %p170
        %p312 = pneg %p167
        %p313 = pneg %p191
        %p314 = pneg %p188
        %p315 = pneg %p212
        %p316 = pneg %p209
        %p317 = pneg %p238
        %p318 = pneg %p235
        %s319 = sand.u32 %s225, 1
        %s320 = scalar_lea.sflag [#allocation3], %s319
        %s321 = sand.u32 %s225, 1
        %s322 = smul.addr %s321, 8
        %s323 = scalar_lea.vmem [#allocation2], %s322
        %p324 = scmp.lt.s32.totalorder %s23, 1
        %s325 = scalar_select %p324, %s23, 1
        %s326 = smul.addr %s325, 8
        %s327 = scalar_lea.vmem %s0, %s326
        %v329 = vld [vmem:[%s327] sm:$0xff]
        %v330 = vld [vmem:[%s1] sm:$0x1]
        %v331 = vld [vmem:[%s2] sm:$0x1]
        %vm332 = vcmask 261120
        %v333 = vsel %vm332, %v329, 0.0
        %334 = vadd.xlane.f32.xlu0 %v333
        %v335 = vpop.xlane.xlu0 %334
        %v336 = vrcp.pop 32.0
        %v337 = vmul.f32 %v335, %v336
        %v338 = vsub.f32 %v329, %v337
        %v339 = vmul.f32 %v338, %v338
        %v340 = vsel %vm332, %v339, 0.0
        %341 = vadd.xlane.f32.xlu0 %v340
        %v342 = vpop.xlane.xlu0 %341
        %v343 = vmul.f32 %v342, %v336
        %v344 = vadd.f32 %v343, 1e-06
        %v345 = vrsqrt.pop %v344
        %v346 = vmul.f32 %v338, %v345
        %v348 = vlaneseq
        %v349 = vshrl.u32 %v348, 7
        %v350 = vsub.s32 0, %v349
        %v351 = vrot.slane %v330, %v350
        %v353 = vmul.f32 %v346, %v351
        %v355 = vlaneseq
        %v356 = vshrl.u32 %v355, 7
        %v357 = vsub.s32 0, %v356
        %v358 = vrot.slane %v331, %v357
        %v360 = vadd.f32 %v353, %v358
        %v361 = vpack.c.bf16 %v360, %v360
        %v362 = vld [vmem:[%s3] sm:$0xf]
        %v363 = vld [vmem:[%s3 + $0x4] sm:$0xf]
        %v364 = vld [vmem:[%s3 + $0x8] sm:$0xf]
        %v365 = vld [vmem:[%s3 + $0xc] sm:$0xf]
        %v366 = vld [vmem:[%s4] sm:$0x1]
        %v368 = vlaneseq
        %v369 = vshrl.u32 %v368, 7
        %v370 = vsub.s32 0, %v369
        %v371 = vrot.slane %v366, %v370
        %v377 = vunpack.c.l.b16 %v362
        %v378 = vunpack.c.l.b16 %v363
        %v379 = vunpack.c.l.b16 %v364
        %v380 = vunpack.c.l.b16 %v365
        %v381 = vpack.c.b16 %v378, %v377
        %v382 = vpack.c.b16 %v380, %v379
        %v386 = vsel %vm332, %v361, 0
        %388 = vmatprep.subr.bf16.mxu0 0
        %389 = vmatpush1.bf16.msra.mxu0 %v381
        %390 = vmatprep.subr.bf16.mxu0 0
        %391 = vmatpush1.bf16.msra.mxu0 %v382
        %392 = vmatprep.subr.bf16.mxu0 0
        %393 = vmatpush1.bf16.msra.mxu0 0
        %394 = vmatprep.subr.bf16.mxu0 0
        %395 = vmatpush1.bf16.msra.mxu0 0
        %396 = vmatprep.subr.bf16.mxu0 0
        %397 = vmatpush1.bf16.msra.mxu0 0
        %398 = vmatprep.subr.bf16.mxu0 0
        %399 = vmatpush1.bf16.msra.mxu0 0
        %400 = vmatprep.subr.bf16.mxu0 0
        %401 = vmatpush1.bf16.msra.mxu0 0
        %402 = vmatprep.subr.bf16.mxu0 0
        %403 = vmatpush1.bf16.msra.mxu0 0
        %404 = vmatprep.subr.bf16.mxu0 0
        %405 = vmatpush1.bf16.msra.mxu0 0
        %406 = vmatprep.subr.bf16.mxu0 0
        %407 = vmatpush1.bf16.msra.mxu0 0
        %408 = vmatprep.subr.bf16.mxu0 0
        %409 = vmatpush1.bf16.msra.mxu0 0
        %410 = vmatprep.subr.bf16.mxu0 0
        %411 = vmatpush1.bf16.msra.mxu0 0
        %412 = vmatprep.subr.bf16.mxu0 0
        %413 = vmatpush1.bf16.msra.mxu0 0
        %414 = vmatprep.subr.bf16.mxu0 0
        %415 = vmatpush1.bf16.msra.mxu0 0
        %416 = vmatprep.subr.bf16.mxu0 0
        %417 = vmatpush1.bf16.msra.mxu0 0
        %418 = vmatprep.subr.bf16.mxu0 0
        %419 = vmatpush1.bf16.msra.mxu0 0
        %420 = vmatprep.mubr.bf16.mxu0 0
        %421 = vmatmul.mubr.bf16.gmra.mrb[0].mxu0 %v386
        %v422 = vpop.f32.mrb[0].mxu0
        %v423 = vadd.f32 %v371, %v422
        %v424 = vpop.f32.mrb[0].mxu0
        %v425 = vpop.f32.mrb[0].mxu0
        %v426 = vpop.f32.mrb[0].mxu0
        %427 = vdwg.mxu0
        %v428 = vpack.c.bf16 %v423, %v423
        %430 = vrot.lane.b32.xlu0 %v428, 96
        %v431 = vpop.permute.xlu0 %430
        %vm432 = vcmask 64512
        %v434 = vsel %vm432, %v428, 0
        %v437 = vsel %vm432, %v431, 0
        %439 = vmatprep.subr.bf16.mxu0 0
        %440 = vmatpush1.bf16.xpose.msra.mxu0 %v437
        %441 = vmatprep.subr.bf16.mxu0 0
        %442 = vmatpush1.bf16.xpose.msra.mxu0 0
        %443 = vmatprep.subr.bf16.mxu0 0
        %444 = vmatpush1.bf16.xpose.msra.mxu0 0
        %445 = vmatprep.subr.bf16.mxu0 0
        %446 = vmatpush1.bf16.xpose.msra.mxu0 0
        %447 = vmatprep.subr.bf16.mxu0 0
        %448 = vmatpush1.bf16.xpose.msra.mxu0 0
        %449 = vmatprep.subr.bf16.mxu0 0
        %450 = vmatpush1.bf16.xpose.msra.mxu0 0
        %451 = vmatprep.subr.bf16.mxu0 0
        %452 = vmatpush1.bf16.xpose.msra.mxu0 0
        %453 = vmatprep.subr.bf16.mxu0 0
        %454 = vmatpush1.bf16.xpose.msra.mxu0 0
        %455 = vmatprep.subr.bf16.mxu0 0
        %456 = vmatpush1.bf16.xpose.msra.mxu0 0
        %457 = vmatprep.subr.bf16.mxu0 0
        %458 = vmatpush1.bf16.xpose.msra.mxu0 0
        %459 = vmatprep.subr.bf16.mxu0 0
        %460 = vmatpush1.bf16.xpose.msra.mxu0 0
        %461 = vmatprep.subr.bf16.mxu0 0
        %462 = vmatpush1.bf16.xpose.msra.mxu0 0
        %463 = vmatprep.subr.bf16.mxu0 0
        %464 = vmatpush1.bf16.xpose.msra.mxu0 0
        %465 = vmatprep.subr.bf16.mxu0 0
        %466 = vmatpush1.bf16.xpose.msra.mxu0 0
        %467 = vmatprep.subr.bf16.mxu0 0
        %468 = vmatpush1.bf16.xpose.msra.mxu0 0
        %469 = vmatprep.subr.bf16.mxu0 0
        %470 = vmatpush1.bf16.xpose.msra.mxu0 0
        %471 = vmatprep.mubr.bf16.mxu0 0
        %472 = vmatmul.mubr.bf16.gmra.mrb[0].mxu0 %v434
        %v473 = vpop.f32.mrb[0].mxu0
        %v474 = vadd.f32 0.0, %v473
        %v475 = vpop.f32.mrb[0].mxu0
        %v476 = vpop.f32.mrb[0].mxu0
        %v477 = vpop.f32.mrb[0].mxu0
        %478 = vdwg.mxu0
        %v479 = vsel %vm432, %v474, -inf
        %480 = vmax.xlane.f32.xlu0 %v479
        %v481 = vpop.xlane.xlu0 %480
        %v482 = vsub.f32 %v474, %v481
        %v483 = vmul.f32 %v482, 1.442695
        %v484 = vpow.pop %v483
        %v485 = vsel %vm432, %v484, 0.0
        %486 = vadd.xlane.f32.xlu0 %v485
        %v487 = vpop.xlane.xlu0 %486
        %v488 = vrcp.pop %v487
        %v489 = vmul.f32 %v484, %v488
        %v490 = vpack.c.bf16 %v489, %v489
        %491 = vrot.lane.b32.xlu0 %v428, 64
        %v492 = vpop.permute.xlu0 %491
        %v494 = vsel %vm432, %v490, 0
        %vm496 = vcmask 1043456
        %v498 = vsel %vm496, %v492, 0
        %500 = vmatprep.subr.bf16.mxu0 0
        %501 = vmatpush1.bf16.msra.mxu0 %v498
        %502 = vmatprep.subr.bf16.mxu0 0
        %503 = vmatpush1.bf16.msra.mxu0 0
        %504 = vmatprep.subr.bf16.mxu0 0
        %505 = vmatpush1.bf16.msra.mxu0 0
        %506 = vmatprep.subr.bf16.mxu0 0
        %507 = vmatpush1.bf16.msra.mxu0 0
        %508 = vmatprep.subr.bf16.mxu0 0
        %509 = vmatpush1.bf16.msra.mxu0 0
        %510 = vmatprep.subr.bf16.mxu0 0
        %511 = vmatpush1.bf16.msra.mxu0 0
        %512 = vmatprep.subr.bf16.mxu0 0
        %513 = vmatpush1.bf16.msra.mxu0 0
        %514 = vmatprep.subr.bf16.mxu0 0
        %515 = vmatpush1.bf16.msra.mxu0 0
        %516 = vmatprep.subr.bf16.mxu0 0
        %517 = vmatpush1.bf16.msra.mxu0 0
        %518 = vmatprep.subr.bf16.mxu0 0
        %519 = vmatpush1.bf16.msra.mxu0 0
        %520 = vmatprep.subr.bf16.mxu0 0
        %521 = vmatpush1.bf16.msra.mxu0 0
        %522 = vmatprep.subr.bf16.mxu0 0
        %523 = vmatpush1.bf16.msra.mxu0 0
        %524 = vmatprep.subr.bf16.mxu0 0
        %525 = vmatpush1.bf16.msra.mxu0 0
        %526 = vmatprep.subr.bf16.mxu0 0
        %527 = vmatpush1.bf16.msra.mxu0 0
        %528 = vmatprep.subr.bf16.mxu0 0
        %529 = vmatpush1.bf16.msra.mxu0 0
        %530 = vmatprep.subr.bf16.mxu0 0
        %531 = vmatpush1.bf16.msra.mxu0 0
        %532 = vmatprep.mubr.bf16.mxu0 0
        %533 = vmatmul.mubr.bf16.gmra.mrb[0].mxu0 %v494
        %v534 = vpop.f32.mrb[0].mxu0
        %v535 = vadd.f32 0.0, %v534
        %v536 = vpop.f32.mrb[0].mxu0
        %v537 = vpop.f32.mrb[0].mxu0
        %v538 = vpop.f32.mrb[0].mxu0
        %539 = vdwg.mxu0
        %540 = vrot.lane.b32.xlu0 %v428, 120
        %v541 = vpop.permute.xlu0 %540
        %542 = vrot.lane.b32.xlu0 %v428, 88
        %v543 = vpop.permute.xlu0 %542
        %v545 = vsel %vm432, %v541, 0
        %v548 = vsel %vm432, %v543, 0
        %550 = vmatprep.subr.bf16.mxu0 0
        %551 = vmatpush1.bf16.xpose.msra.mxu0 %v548
        %552 = vmatprep.subr.bf16.mxu0 0
        %553 = vmatpush1.bf16.xpose.msra.mxu0 0
        %554 = vmatprep.subr.bf16.mxu0 0
        %555 = vmatpush1.bf16.xpose.msra.mxu0 0
        %556 = vmatprep.subr.bf16.mxu0 0
        %557 = vmatpush1.bf16.xpose.msra.mxu0 0
        %558 = vmatprep.subr.bf16.mxu0 0
        %559 = vmatpush1.bf16.xpose.msra.mxu0 0
        %560 = vmatprep.subr.bf16.mxu0 0
        %561 = vmatpush1.bf16.xpose.msra.mxu0 0
        %562 = vmatprep.subr.bf16.mxu0 0
        %563 = vmatpush1.bf16.xpose.msra.mxu0 0
        %564 = vmatprep.subr.bf16.mxu0 0
        %565 = vmatpush1.bf16.xpose.msra.mxu0 0
        %566 = vmatprep.subr.bf16.mxu0 0
        %567 = vmatpush1.bf16.xpose.msra.mxu0 0
        %568 = vmatprep.subr.bf16.mxu0 0
        %569 = vmatpush1.bf16.xpose.msra.mxu0 0
        %570 = vmatprep.subr.bf16.mxu0 0
        %571 = vmatpush1.bf16.xpose.msra.mxu0 0
        %572 = vmatprep.subr.bf16.mxu0 0
        %573 = vmatpush1.bf16.xpose.msra.mxu0 0
        %574 = vmatprep.subr.bf16.mxu0 0
        %575 = vmatpush1.bf16.xpose.msra.mxu0 0
        %576 = vmatprep.subr.bf16.mxu0 0
        %577 = vmatpush1.bf16.xpose.msra.mxu0 0
        %578 = vmatprep.subr.bf16.mxu0 0
        %579 = vmatpush1.bf16.xpose.msra.mxu0 0
        %580 = vmatprep.subr.bf16.mxu0 0
        %581 = vmatpush1.bf16.xpose.msra.mxu0 0
        %582 = vmatprep.mubr.bf16.mxu0 0
        %583 = vmatmul.mubr.bf16.gmra.mrb[0].mxu0 %v545
        %v584 = vpop.f32.mrb[0].mxu0
        %v585 = vadd.f32 0.0, %v584
        %v586 = vpop.f32.mrb[0].mxu0
        %v587 = vpop.f32.mrb[0].mxu0
        %v588 = vpop.f32.mrb[0].mxu0
        %589 = vdwg.mxu0
        %v590 = vsel %vm432, %v585, -inf
        %591 = vmax.xlane.f32.xlu0 %v590
        %v592 = vpop.xlane.xlu0 %591
        %v593 = vsub.f32 %v585, %v592
        %v594 = vmul.f32 %v593, 1.442695
        %v595 = vpow.pop %v594
        %v596 = vsel %vm432, %v595, 0.0
        %597 = vadd.xlane.f32.xlu0 %v596
        %v598 = vpop.xlane.xlu0 %597
        %v599 = vrcp.pop %v598
        %v600 = vmul.f32 %v595, %v599
        %v601 = vpack.c.bf16 %v600, %v600
        %602 = vrot.lane.b32.xlu0 %v428, 56
        %v603 = vpop.permute.xlu0 %602
        %v605 = vsel %vm432, %v601, 0
        %v608 = vsel %vm496, %v603, 0
        %610 = vmatprep.subr.bf16.mxu0 0
        %611 = vmatpush1.bf16.msra.mxu0 %v608
        %612 = vmatprep.subr.bf16.mxu0 0
        %613 = vmatpush1.bf16.msra.mxu0 0
        %614 = vmatprep.subr.bf16.mxu0 0
        %615 = vmatpush1.bf16.msra.mxu0 0
        %616 = vmatprep.subr.bf16.mxu0 0
        %617 = vmatpush1.bf16.msra.mxu0 0
        %618 = vmatprep.subr.bf16.mxu0 0
        %619 = vmatpush1.bf16.msra.mxu0 0
        %620 = vmatprep.subr.bf16.mxu0 0
        %621 = vmatpush1.bf16.msra.mxu0 0
        %622 = vmatprep.subr.bf16.mxu0 0
        %623 = vmatpush1.bf16.msra.mxu0 0
        %624 = vmatprep.subr.bf16.mxu0 0
        %625 = vmatpush1.bf16.msra.mxu0 0
        %626 = vmatprep.subr.bf16.mxu0 0
        %627 = vmatpush1.bf16.msra.mxu0 0
        %628 = vmatprep.subr.bf16.mxu0 0
        %629 = vmatpush1.bf16.msra.mxu0 0
        %630 = vmatprep.subr.bf16.mxu0 0
        %631 = vmatpush1.bf16.msra.mxu0 0
        %632 = vmatprep.subr.bf16.mxu0 0
        %633 = vmatpush1.bf16.msra.mxu0 0
        %634 = vmatprep.subr.bf16.mxu0 0
        %635 = vmatpush1.bf16.msra.mxu0 0
        %636 = vmatprep.subr.bf16.mxu0 0
        %637 = vmatpush1.bf16.msra.mxu0 0
        %638 = vmatprep.subr.bf16.mxu0 0
        %639 = vmatpush1.bf16.msra.mxu0 0
        %640 = vmatprep.subr.bf16.mxu0 0
        %641 = vmatpush1.bf16.msra.mxu0 0
        %642 = vmatprep.mubr.bf16.mxu0 0
        %643 = vmatmul.mubr.bf16.gmra.mrb[0].mxu0 %v605
        %v644 = vpop.f32.mrb[0].mxu0
        %v645 = vadd.f32 0.0, %v644
        %v646 = vpop.f32.mrb[0].mxu0
        %v647 = vpop.f32.mrb[0].mxu0
        %v648 = vpop.f32.mrb[0].mxu0
        %649 = vdwg.mxu0
        %650 = vrot.lane.b32.xlu0 %v428, 112
        %v651 = vpop.permute.xlu0 %650
        %652 = vrot.lane.b32.xlu0 %v428, 80
        %v653 = vpop.permute.xlu0 %652
        %v655 = vsel %vm432, %v651, 0
        %v658 = vsel %vm432, %v653, 0
        %660 = vmatprep.subr.bf16.mxu0 0
        %661 = vmatpush1.bf16.xpose.msra.mxu0 %v658
        %662 = vmatprep.subr.bf16.mxu0 0
        %663 = vmatpush1.bf16.xpose.msra.mxu0 0
        %664 = vmatprep.subr.bf16.mxu0 0
        %665 = vmatpush1.bf16.xpose.msra.mxu0 0
        %666 = vmatprep.subr.bf16.mxu0 0
        %667 = vmatpush1.bf16.xpose.msra.mxu0 0
        %668 = vmatprep.subr.bf16.mxu0 0
        %669 = vmatpush1.bf16.xpose.msra.mxu0 0
        %670 = vmatprep.subr.bf16.mxu0 0
        %671 = vmatpush1.bf16.xpose.msra.mxu0 0
        %672 = vmatprep.subr.bf16.mxu0 0
        %673 = vmatpush1.bf16.xpose.msra.mxu0 0
        %674 = vmatprep.subr.bf16.mxu0 0
        %675 = vmatpush1.bf16.xpose.msra.mxu0 0
        %676 = vmatprep.subr.bf16.mxu0 0
        %677 = vmatpush1.bf16.xpose.msra.mxu0 0
        %678 = vmatprep.subr.bf16.mxu0 0
        %679 = vmatpush1.bf16.xpose.msra.mxu0 0
        %680 = vmatprep.subr.bf16.mxu0 0
        %681 = vmatpush1.bf16.xpose.msra.mxu0 0
        %682 = vmatprep.subr.bf16.mxu0 0
        %683 = vmatpush1.bf16.xpose.msra.mxu0 0
        %684 = vmatprep.subr.bf16.mxu0 0
        %685 = vmatpush1.bf16.xpose.msra.mxu0 0
        %686 = vmatprep.subr.bf16.mxu0 0
        %687 = vmatpush1.bf16.xpose.msra.mxu0 0
        %688 = vmatprep.subr.bf16.mxu0 0
        %689 = vmatpush1.bf16.xpose.msra.mxu0 0
        %690 = vmatprep.subr.bf16.mxu0 0
        %691 = vmatpush1.bf16.xpose.msra.mxu0 0
        %692 = vmatprep.mubr.bf16.mxu0 0
        %693 = vmatmul.mubr.bf16.gmra.mrb[0].mxu0 %v655
        %v694 = vpop.f32.mrb[0].mxu0
        %v695 = vadd.f32 0.0, %v694
        %v696 = vpop.f32.mrb[0].mxu0
        %v697 = vpop.f32.mrb[0].mxu0
        %v698 = vpop.f32.mrb[0].mxu0
        %699 = vdwg.mxu0
        %v700 = vsel %vm432, %v695, -inf
        %701 = vmax.xlane.f32.xlu0 %v700
        %v702 = vpop.xlane.xlu0 %701
        %v703 = vsub.f32 %v695, %v702
        %v704 = vmul.f32 %v703, 1.442695
        %v705 = vpow.pop %v704
        %v706 = vsel %vm432, %v705, 0.0
        %707 = vadd.xlane.f32.xlu0 %v706
        %v708 = vpop.xlane.xlu0 %707
        %v709 = vrcp.pop %v708
        %v710 = vmul.f32 %v705, %v709
        %v711 = vpack.c.bf16 %v710, %v710
        %712 = vrot.lane.b32.xlu0 %v428, 48
        %v713 = vpop.permute.xlu0 %712
        %v715 = vsel %vm432, %v711, 0
        %v718 = vsel %vm496, %v713, 0
        %720 = vmatprep.subr.bf16.mxu0 0
        %721 = vmatpush1.bf16.msra.mxu0 %v718
        %722 = vmatprep.subr.bf16.mxu0 0
        %723 = vmatpush1.bf16.msra.mxu0 0
        %724 = vmatprep.subr.bf16.mxu0 0
        %725 = vmatpush1.bf16.msra.mxu0 0
        %726 = vmatprep.subr.bf16.mxu0 0
        %727 = vmatpush1.bf16.msra.mxu0 0
        %728 = vmatprep.subr.bf16.mxu0 0
        %729 = vmatpush1.bf16.msra.mxu0 0
        %730 = vmatprep.subr.bf16.mxu0 0
        %731 = vmatpush1.bf16.msra.mxu0 0
        %732 = vmatprep.subr.bf16.mxu0 0
        %733 = vmatpush1.bf16.msra.mxu0 0
        %734 = vmatprep.subr.bf16.mxu0 0
        %735 = vmatpush1.bf16.msra.mxu0 0
        %736 = vmatprep.subr.bf16.mxu0 0
        %737 = vmatpush1.bf16.msra.mxu0 0
        %738 = vmatprep.subr.bf16.mxu0 0
        %739 = vmatpush1.bf16.msra.mxu0 0
        %740 = vmatprep.subr.bf16.mxu0 0
        %741 = vmatpush1.bf16.msra.mxu0 0
        %742 = vmatprep.subr.bf16.mxu0 0
        %743 = vmatpush1.bf16.msra.mxu0 0
        %744 = vmatprep.subr.bf16.mxu0 0
        %745 = vmatpush1.bf16.msra.mxu0 0
        %746 = vmatprep.subr.bf16.mxu0 0
        %747 = vmatpush1.bf16.msra.mxu0 0
        %748 = vmatprep.subr.bf16.mxu0 0
        %749 = vmatpush1.bf16.msra.mxu0 0
        %750 = vmatprep.subr.bf16.mxu0 0
        %751 = vmatpush1.bf16.msra.mxu0 0
        %752 = vmatprep.mubr.bf16.mxu0 0
        %753 = vmatmul.mubr.bf16.gmra.mrb[0].mxu0 %v715
        %v754 = vpop.f32.mrb[0].mxu0
        %v755 = vadd.f32 0.0, %v754
        %v756 = vpop.f32.mrb[0].mxu0
        %v757 = vpop.f32.mrb[0].mxu0
        %v758 = vpop.f32.mrb[0].mxu0
        %759 = vdwg.mxu0
        %760 = vrot.lane.b32.xlu0 %v428, 104
        %v761 = vpop.permute.xlu0 %760
        %762 = vrot.lane.b32.xlu0 %v428, 72
        %v763 = vpop.permute.xlu0 %762
        %v765 = vsel %vm432, %v761, 0
        %v768 = vsel %vm432, %v763, 0
        %770 = vmatprep.subr.bf16.mxu0 0
        %771 = vmatpush1.bf16.xpose.msra.mxu0 %v768
        %772 = vmatprep.subr.bf16.mxu0 0
        %773 = vmatpush1.bf16.xpose.msra.mxu0 0
        %774 = vmatprep.subr.bf16.mxu0 0
        %775 = vmatpush1.bf16.xpose.msra.mxu0 0
        %776 = vmatprep.subr.bf16.mxu0 0
        %777 = vmatpush1.bf16.xpose.msra.mxu0 0
        %778 = vmatprep.subr.bf16.mxu0 0
        %779 = vmatpush1.bf16.xpose.msra.mxu0 0
        %780 = vmatprep.subr.bf16.mxu0 0
        %781 = vmatpush1.bf16.xpose.msra.mxu0 0
        %782 = vmatprep.subr.bf16.mxu0 0
        %783 = vmatpush1.bf16.xpose.msra.mxu0 0
        %784 = vmatprep.subr.bf16.mxu0 0
        %785 = vmatpush1.bf16.xpose.msra.mxu0 0
        %786 = vmatprep.subr.bf16.mxu0 0
        %787 = vmatpush1.bf16.xpose.msra.mxu0 0
        %788 = vmatprep.subr.bf16.mxu0 0
        %789 = vmatpush1.bf16.xpose.msra.mxu0 0
        %790 = vmatprep.subr.bf16.mxu0 0
        %791 = vmatpush1.bf16.xpose.msra.mxu0 0
        %792 = vmatprep.subr.bf16.mxu0 0
        %793 = vmatpush1.bf16.xpose.msra.mxu0 0
        %794 = vmatprep.subr.bf16.mxu0 0
        %795 = vmatpush1.bf16.xpose.msra.mxu0 0
        %796 = vmatprep.subr.bf16.mxu0 0
        %797 = vmatpush1.bf16.xpose.msra.mxu0 0
        %798 = vmatprep.subr.bf16.mxu0 0
        %799 = vmatpush1.bf16.xpose.msra.mxu0 0
        %800 = vmatprep.subr.bf16.mxu0 0
        %801 = vmatpush1.bf16.xpose.msra.mxu0 0
        %802 = vmatprep.mubr.bf16.mxu0 0
        %803 = vmatmul.mubr.bf16.gmra.mrb[0].mxu0 %v765
        %v804 = vpop.f32.mrb[0].mxu0
        %v805 = vadd.f32 0.0, %v804
        %v806 = vpop.f32.mrb[0].mxu0
        %v807 = vpop.f32.mrb[0].mxu0
        %v808 = vpop.f32.mrb[0].mxu0
        %809 = vdwg.mxu0
        %v810 = vsel %vm432, %v805, -inf
        %811 = vmax.xlane.f32.xlu0 %v810
        %v812 = vpop.xlane.xlu0 %811
        %v813 = vsub.f32 %v805, %v812
        %v814 = vmul.f32 %v813, 1.442695
        %v815 = vpow.pop %v814
        %v816 = vsel %vm432, %v815, 0.0
        %817 = vadd.xlane.f32.xlu0 %v816
        %v818 = vpop.xlane.xlu0 %817
        %v819 = vrcp.pop %v818
        %v820 = vmul.f32 %v815, %v819
        %v821 = vpack.c.bf16 %v820, %v820
        %822 = vrot.lane.b32.xlu0 %v428, 40
        %v823 = vpop.permute.xlu0 %822
        %v825 = vsel %vm432, %v821, 0
        %v828 = vsel %vm496, %v823, 0
        %830 = vmatprep.subr.bf16.mxu0 0
        %831 = vmatpush1.bf16.msra.mxu0 %v828
        %832 = vmatprep.subr.bf16.mxu0 0
        %833 = vmatpush1.bf16.msra.mxu0 0
        %834 = vmatprep.subr.bf16.mxu0 0
        %835 = vmatpush1.bf16.msra.mxu0 0
        %836 = vmatprep.subr.bf16.mxu0 0
        %837 = vmatpush1.bf16.msra.mxu0 0
        %838 = vmatprep.subr.bf16.mxu0 0
        %839 = vmatpush1.bf16.msra.mxu0 0
        %840 = vmatprep.subr.bf16.mxu0 0
        %841 = vmatpush1.bf16.msra.mxu0 0
        %842 = vmatprep.subr.bf16.mxu0 0
        %843 = vmatpush1.bf16.msra.mxu0 0
        %844 = vmatprep.subr.bf16.mxu0 0
        %845 = vmatpush1.bf16.msra.mxu0 0
        %846 = vmatprep.subr.bf16.mxu0 0
        %847 = vmatpush1.bf16.msra.mxu0 0
        %848 = vmatprep.subr.bf16.mxu0 0
        %849 = vmatpush1.bf16.msra.mxu0 0
        %850 = vmatprep.subr.bf16.mxu0 0
        %851 = vmatpush1.bf16.msra.mxu0 0
        %852 = vmatprep.subr.bf16.mxu0 0
        %853 = vmatpush1.bf16.msra.mxu0 0
        %854 = vmatprep.subr.bf16.mxu0 0
        %855 = vmatpush1.bf16.msra.mxu0 0
        %856 = vmatprep.subr.bf16.mxu0 0
        %857 = vmatpush1.bf16.msra.mxu0 0
        %858 = vmatprep.subr.bf16.mxu0 0
        %859 = vmatpush1.bf16.msra.mxu0 0
        %860 = vmatprep.subr.bf16.mxu0 0
        %861 = vmatpush1.bf16.msra.mxu0 0
        %862 = vmatprep.mubr.bf16.mxu0 0
        %863 = vmatmul.mubr.bf16.gmra.mrb[0].mxu0 %v825
        %v864 = vpop.f32.mrb[0].mxu0
        %v865 = vadd.f32 0.0, %v864
        %v866 = vpop.f32.mrb[0].mxu0
        %v867 = vpop.f32.mrb[0].mxu0
        %v868 = vpop.f32.mrb[0].mxu0
        %869 = vdwg.mxu0
        %871 = vrot.lane.b32.xlu0 %v645, 8
        %v872 = vpop.permute.xlu0 %871
        %875 = vrot.lane.b32.xlu0 %v755, 16
        %v876 = vpop.permute.xlu0 %875
        %879 = vrot.lane.b32.xlu0 %v865, 24
        %v880 = vpop.permute.xlu0 %879
        %v882 = vsel %vm432, %v535, %v872
        %vm883 = vcmask 130048
        %v884 = vsel %vm883, %v882, %v876
        %vm885 = vcmask 195584
        %v886 = vsel %vm885, %v884, %v880
        %v887 = vadd.f32 %v329, %v886
        %v888 = vsel %vm332, %v887, 0.0
        %889 = vadd.xlane.f32.xlu0 %v888
        %v890 = vpop.xlane.xlu0 %889
        %v891 = vmul.f32 %v890, %v336
        %v892 = vsub.f32 %v887, %v891
        %v893 = vmul.f32 %v892, %v892
        %v894 = vsel %vm332, %v893, 0.0
        %895 = vadd.xlane.f32.xlu0 %v894
        %v896 = vpop.xlane.xlu0 %895
        %v897 = vmul.f32 %v896, %v336
        %v898 = vadd.f32 %v897, 1e-06
        %v899 = vrsqrt.pop %v898
        %v900 = vmul.f32 %v892, %v899
        %v901 = vmul.f32 %v900, %v351
        %v902 = vadd.f32 %v901, %v358
        %v903 = vpack.c.bf16 %v902, %v902
        %v904 = vld [vmem:[%s5] sm:$0xf]
        %v905 = vld [vmem:[%s5 + $0x4] sm:$0xf]
        %v906 = vld [vmem:[%s5 + $0x8] sm:$0xf]
        %v907 = vld [vmem:[%s5 + $0xc] sm:$0xf]
        %v908 = vld [vmem:[%s6] sm:$0x1]
        %v910 = vlaneseq
        %v911 = vshrl.u32 %v910, 7
        %v912 = vsub.s32 0, %v911
        %v913 = vrot.slane %v908, %v912
        %v919 = vunpack.c.l.b16 %v904
        %v920 = vunpack.c.l.b16 %v905
        %v921 = vunpack.c.l.b16 %v906
        %v922 = vunpack.c.l.b16 %v907
        %v923 = vpack.c.b16 %v920, %v919
        %v924 = vpack.c.b16 %v922, %v921
        %v928 = vsel %vm332, %v903, 0
        %930 = vmatprep.subr.bf16.mxu0 0
        %931 = vmatpush1.bf16.msra.mxu0 %v923
        %932 = vmatprep.subr.bf16.mxu0 0
        %933 = vmatpush1.bf16.msra.mxu0 %v924
        %934 = vmatprep.subr.bf16.mxu0 0
        %935 = vmatpush1.bf16.msra.mxu0 0
        %936 = vmatprep.subr.bf16.mxu0 0
        %937 = vmatpush1.bf16.msra.mxu0 0
        %938 = vmatprep.subr.bf16.mxu0 0
        %939 = vmatpush1.bf16.msra.mxu0 0
        %940 = vmatprep.subr.bf16.mxu0 0
        %941 = vmatpush1.bf16.msra.mxu0 0
        %942 = vmatprep.subr.bf16.mxu0 0
        %943 = vmatpush1.bf16.msra.mxu0 0
        %944 = vmatprep.subr.bf16.mxu0 0
        %945 = vmatpush1.bf16.msra.mxu0 0
        %946 = vmatprep.subr.bf16.mxu0 0
        %947 = vmatpush1.bf16.msra.mxu0 0
        %948 = vmatprep.subr.bf16.mxu0 0
        %949 = vmatpush1.bf16.msra.mxu0 0
        %950 = vmatprep.subr.bf16.mxu0 0
        %951 = vmatpush1.bf16.msra.mxu0 0
        %952 = vmatprep.subr.bf16.mxu0 0
        %953 = vmatpush1.bf16.msra.mxu0 0
        %954 = vmatprep.subr.bf16.mxu0 0
        %955 = vmatpush1.bf16.msra.mxu0 0
        %956 = vmatprep.subr.bf16.mxu0 0
        %957 = vmatpush1.bf16.msra.mxu0 0
        %958 = vmatprep.subr.bf16.mxu0 0
        %959 = vmatpush1.bf16.msra.mxu0 0
        %960 = vmatprep.subr.bf16.mxu0 0
        %961 = vmatpush1.bf16.msra.mxu0 0
        %962 = vmatprep.mubr.bf16.mxu0 0
        %963 = vmatmul.mubr.bf16.gmra.mrb[0].mxu0 %v928
        %v964 = vpop.f32.mrb[0].mxu0
        %v965 = vadd.f32 %v913, %v964
        %v966 = vpop.f32.mrb[0].mxu0
        %v967 = vpop.f32.mrb[0].mxu0
        %v968 = vpop.f32.mrb[0].mxu0
        %969 = vdwg.mxu0
        %v970 = vmul.f32 %v965, 0.5
        %v971 = vmul.f32 %v965, 0.044715
        %v972 = vmul.f32 %v971, %v965
        %v973 = vmul.f32 %v972, %v965
        %v974 = vadd.f32 %v965, %v973
        %v975 = vmul.f32 %v974, 0.7978846
        %v976 = vtanh.pop %v975
        %v977 = vadd.f32 %v976, 1.0
        %v978 = vmul.f32 %v970, %v977
        %v979 = vpack.c.bf16 %v978, %v978
        %v980 = vld [vmem:[%s7] sm:$0xf]
        %v981 = vld [vmem:[%s7 + $0x4] sm:$0xf]
        %v982 = vld [vmem:[%s7 + $0x8] sm:$0xf]
        %v983 = vld [vmem:[%s7 + $0xc] sm:$0xf]
        %v984 = vld [vmem:[%s7 + $0x10] sm:$0xf]
        %v985 = vld [vmem:[%s7 + $0x14] sm:$0xf]
        %v986 = vld [vmem:[%s7 + $0x18] sm:$0xf]
        %v987 = vld [vmem:[%s7 + $0x1c] sm:$0xf]
        %v988 = vld [vmem:[%s8] sm:$0x1]
        %v990 = vlaneseq
        %v991 = vshrl.u32 %v990, 7
        %v992 = vsub.s32 0, %v991
        %v993 = vrot.slane %v988, %v992
        %v1003 = vunpack.c.l.b16 %v980
        %v1004 = vunpack.c.l.b16 %v981
        %v1005 = vunpack.c.l.b16 %v982
        %v1006 = vunpack.c.l.b16 %v983
        %v1007 = vunpack.c.l.b16 %v984
        %v1008 = vunpack.c.l.b16 %v985
        %v1009 = vunpack.c.l.b16 %v986
        %v1010 = vunpack.c.l.b16 %v987
        %v1011 = vpack.c.b16 %v1004, %v1003
        %v1012 = vpack.c.b16 %v1006, %v1005
        %v1013 = vpack.c.b16 %v1008, %v1007
        %v1014 = vpack.c.b16 %v1010, %v1009
        %vm1019 = vcmask 523264
        %v1021 = vsel %vm1019, %v979, 0
        %1023 = vmatprep.subr.bf16.mxu0 0
        %1024 = vmatpush1.bf16.msra.mxu0 %v1011
        %1025 = vmatprep.subr.bf16.mxu0 0
        %1026 = vmatpush1.bf16.msra.mxu0 %v1012
        %1027 = vmatprep.subr.bf16.mxu0 0
        %1028 = vmatpush1.bf16.msra.mxu0 %v1013
        %1029 = vmatprep.subr.bf16.mxu0 0
        %1030 = vmatpush1.bf16.msra.mxu0 %v1014
        %1031 = vmatprep.subr.bf16.mxu0 0
        %1032 = vmatpush1.bf16.msra.mxu0 0
        %1033 = vmatprep.subr.bf16.mxu0 0
        %1034 = vmatpush1.bf16.msra.mxu0 0
        %1035 = vmatprep.subr.bf16.mxu0 0
        %1036 = vmatpush1.bf16.msra.mxu0 0
        %1037 = vmatprep.subr.bf16.mxu0 0
        %1038 = vmatpush1.bf16.msra.mxu0 0
        %1039 = vmatprep.subr.bf16.mxu0 0
        %1040 = vmatpush1.bf16.msra.mxu0 0
        %1041 = vmatprep.subr.bf16.mxu0 0
        %1042 = vmatpush1.bf16.msra.mxu0 0
        %1043 = vmatprep.subr.bf16.mxu0 0
        %1044 = vmatpush1.bf16.msra.mxu0 0
        %1045 = vmatprep.subr.bf16.mxu0 0
        %1046 = vmatpush1.bf16.msra.mxu0 0
        %1047 = vmatprep.subr.bf16.mxu0 0
        %1048 = vmatpush1.bf16.msra.mxu0 0
        %1049 = vmatprep.subr.bf16.mxu0 0
        %1050 = vmatpush1.bf16.msra.mxu0 0
        %1051 = vmatprep.subr.bf16.mxu0 0
        %1052 = vmatpush1.bf16.msra.mxu0 0
        %1053 = vmatprep.subr.bf16.mxu0 0
        %1054 = vmatpush1.bf16.msra.mxu0 0
        %1055 = vmatprep.mubr.bf16.mxu0 0
        %1056 = vmatmul.mubr.bf16.gmra.mrb[0].mxu0 %v1021
        %v1057 = vpop.f32.mrb[0].mxu0
        %v1058 = vadd.f32 %v993, %v1057
        %v1059 = vpop.f32.mrb[0].mxu0
        %v1060 = vpop.f32.mrb[0].mxu0
        %v1061 = vpop.f32.mrb[0].mxu0
        %1062 = vdwg.mxu0
        %v1063 = vadd.f32 %v887, %v1058
        %1064 = vst.msk [vmem:[%s323] sm:$0xff] %vm332, %v1063
        %s1065 = sand.u32 %s225, 1
        %s1066 = scalar_lea.sflag [#allocation3], %s1065
        %s1067 = sand.u32 %s225, 1
        %s1068 = smul.addr %s1067, 8
        %s1069 = scalar_lea.vmem [#allocation2], %s1068
        // Predicated region
        $region57: #{tpu_custom_call.1} parent=55 // pred_check
          %p1070 = pneg %p235
        $region58: #{tpu_custom_call.1} parent=55 // pred_check_branch
          %1072 = sbr.rel (%p1070) target = $region60
        $region59: #{tpu_custom_call.1} parent=55 // pred_region
          %s1074 = ssub.s32 128, 128
          %1075 = vsyncadd %s1066, %s1074
          %s1076 = smul.addr %s23, 128
          %s1077 = scalar_lea.hbm %s9, %s1076
          %s1079 = sshll.u32 %s1069, 4
          %s1080 = int_to_ptr.vmem [resolvable:$true] %s1079
          %1082 = dma.vmem_to_hbm [thread:$0]  %s1080, 128, %s1077, %s1066
        $region60: #{tpu_custom_call.1} parent=55 // pred_fallthru
          _
      $region56: #{tpu_custom_call.1} parent=5 // pred_fallthru
        _
      %p1083 = scmp.le.s32.totalorder 2, %s18
      // Predicated region
      $region61: #{tpu_custom_call.1} parent=5 // pred_check
        %p1084 = pneg %p1083
      $region62: #{tpu_custom_call.1} parent=5 // pred_check_branch
        %1086 = sbr.rel (%p1084) target = $region64
      $region63: #{tpu_custom_call.1} parent=5 // pred_region
        %s1087 = ssub.s32 %s18, 2
        // Predicated region
        $region65: #{tpu_custom_call.1} parent=63 // pred_check
          %p1088 = pneg %p241
        $region66: #{tpu_custom_call.1} parent=63 // pred_check_branch
          %1090 = sbr.rel (%p1088) target = $region68
        $region67: #{tpu_custom_call.1} parent=63 // pred_region
          %s1091 = sand.u32 %s226, 1
          %s1092 = scalar_lea.sflag [#allocation3], %s1091
          %s1093 = sand.u32 %s226, 1
          %s1094 = smul.addr %s1093, 8
          %s1095 = scalar_lea.vmem [#allocation2], %s1094
          %1096 = dma.done %s1092, 128
        $region68: #{tpu_custom_call.1} parent=63 // pred_fallthru
          _
      $region64: #{tpu_custom_call.1} parent=5 // pred_fallthru
        _
    $region6: #{tpu_custom_call.1} parent=1 // loop_footer
      %s22 = sadd.s32 1, %s18
    $region7: #{tpu_custom_call.1} parent=1 // loop_footer_branch
      %17 = sbr.rel target = $region3
    $region8: #{tpu_custom_call.1} parent=1 // loop_exit
      _
    %1097 = vsyncpa [#allocation3], 1
    %s1098 = scalar_lea.sflag [#allocation3], 1
    %1099 = vsyncpa %s1098, 1

// kernel: tpu_custom_call.1
$region0: #{tpu_custom_call.1}
  #allocation0 [shape = 'u32[]', space=smem, size = 0x4, offset = 0x4, fixed_abs, tag = 'smem constant byte address 0x4 - core index']
  #allocation1 [shape = 'u32[144,128]{1,0:T(1,128)}', space=vmem, size = 0x12000, scoped, tag = 'internal scratch']
  %s0 = inlined_call_operand.vmem [shape: f32[2,8,32], index: 0, kind: input, shape index: {}]
  %s1 = inlined_call_operand.vmem [shape: f32[1,32], index: 1, kind: input, shape index: {}]
  %s2 = inlined_call_operand.vmem [shape: f32[1,32], index: 2, kind: input, shape index: {}]
  %s3 = inlined_call_operand.vmem [shape: bf16[32,96], index: 3, kind: input, shape index: {}]
  %s4 = inlined_call_operand.vmem [shape: f32[1,96], index: 4, kind: input, shape index: {}]
  %s5 = inlined_call_operand.vmem [shape: bf16[32,64], index: 5, kind: input, shape index: {}]
  %s6 = inlined_call_operand.vmem [shape: f32[1,64], index: 6, kind: input, shape index: {}]
  %s7 = inlined_call_operand.vmem [shape: bf16[64,32], index: 7, kind: input, shape index: {}]
  %s8 = inlined_call_operand.vmem [shape: f32[1,32], index: 8, kind: input, shape index: {}]
  %s9 = inlined_call_operand.hbm [shape: f32[2,8,32], index: 9, kind: output, shape index: {}]
  %s10 = sld [smem:[#allocation0]]
  $region69: #{tpu_custom_call.1} parent=0
    _
  %s12 = ssub.s32 1, %s10
  %s13 = scalar_select 0, %s12, %s10
  $region1: #{tpu_custom_call.1} parent=0
    #allocation2 [shape = 'u8[8192]{0}', space=vmem, size = 0x2000, scoped, tag = 'output window, operand 0']
    #allocation3 [shape = 's32[2]{0}', space=sflag, size = 0x8, scoped, tag = 'scoped memory for tpu_custom_call.1']
    %14 = vsyncpa [#allocation3], 0
    %s15 = scalar_lea.sflag [#allocation3], 1
    %16 = vsyncpa %s15, 0
    loop: start=0, step=1, limit=4
    $region2: #{tpu_custom_call.1} parent=1 // loop_pre_header
      _
    $region3: #{tpu_custom_call.1} parent=1 // loop_header
      %s18 = sphi 0, %s22
      %p19 = scmp.ge.s32.totalorder %s18, 4
      %s28 = sphi 0, %s30
      %s31 = sphi 0, %s28
      %s32 = sphi 0, %s31
      %s48 = sphi 0, %s32
      %s52 = sphi 0, %s52
      %s54 = sphi 0, %s52
      %s55 = sphi 0, %s54
      %s69 = sphi 0, %s55
      %s73 = sphi 0, %s73
      %s75 = sphi 0, %s73
      %s76 = sphi 0, %s75
      %s90 = sphi 0, %s76
      %s94 = sphi 0, %s94
      %s96 = sphi 0, %s94
      %s97 = sphi 0, %s96
      %s111 = sphi 0, %s97
      %s115 = sphi 0, %s115
      %s117 = sphi 0, %s115
      %s118 = sphi 0, %s117
      %s132 = sphi 0, %s118
      %s136 = sphi 0, %s136
      %s138 = sphi 0, %s136
      %s139 = sphi 0, %s138
      %s153 = sphi 0, %s139
      %s157 = sphi 0, %s157
      %s159 = sphi 0, %s157
      %s160 = sphi 0, %s159
      %s174 = sphi 0, %s160
      %s178 = sphi 0, %s178
      %s180 = sphi 0, %s178
      %s181 = sphi 0, %s180
      %s195 = sphi 0, %s181
      %s199 = sphi 0, %s199
      %s201 = sphi 0, %s199
      %s202 = sphi 0, %s201
      %s216 = sphi 0, %s202
      %s222 = sphi 0, %s224
      %s225 = sphi 0, %s222
      %s226 = sphi 0, %s225
      %s242 = sphi 0, %s226
    $region4: #{tpu_custom_call.1} parent=1 // loop_header_branch
      %21 = sbr.rel (%p19) target = $region8
    $region5: #{tpu_custom_call.1} parent=1 // loop_body
      %s23 = ssub.s32 %s18, 1
      %s24 = ssub.s32 %s18, 2
      %s25 = sadd.s32 %s18, 1
      %s26 = ssub.s32 %s18, %s25
      %p27 = scmp.eq.s32.totalorder %s26, 0
      %s29 = sadd.s32 %s28, 1
      %s30 = scalar_select %p27, %s28, %s29
      %p33 = pneg %p27
      %p34 = scmp.eq.s32.totalorder %s18, 1
      %p35 = por %p33, %p34
      %p36 = scmp.ne.s32.totalorder %s28, %s31
      %p37 = scmp.eq.s32.totalorder %s18, 0
      %p38 = por %p36, %p37
      %p39 = scmp.ne.s32.totalorder %s28, %s31
      %p40 = scmp.eq.s32.totalorder %s23, 1
      %p41 = por %p39, %p40
      %p42 = scmp.ne.s32.totalorder %s31, %s32
      %p43 = scmp.eq.s32.totalorder %s23, 0
      %p44 = por %p42, %p43
      %p45 = scmp.ne.s32.totalorder %s31, %s32
      %p46 = scmp.eq.s32.totalorder %s24, 1
      %p47 = por %p45, %p46
      %p49 = scmp.ne.s32.totalorder %s32, %s48
      %p50 = scmp.eq.s32.totalorder %s24, 0
      %p51 = por %p49, %p50
      %s53 = sadd.s32 %s52, 1
      %p56 = scmp.eq.s32.totalorder %s18, 1
      %p57 = scmp.ne.s32.totalorder %s52, %s54
      %p58 = scmp.eq.s32.totalorder %s18, 0
      %p59 = por %p57, %p58
      %p60 = scmp.ne.s32.totalorder %s52, %s54
      %p61 = scmp.eq.s32.totalorder %s23, 1
      %p62 = por %p60, %p61
      %p63 = scmp.ne.s32.totalorder %s54, %s55
      %p64 = scmp.eq.s32.totalorder %s23, 0
      %p65 = por %p63, %p64
      %p66 = scmp.ne.s32.totalorder %s54, %s55
      %p67 = scmp.eq.s32.totalorder %s24, 1
      %p68 = por %p66, %p67
      %p70 = scmp.ne.s32.totalorder %s55, %s69
      %p71 = scmp.eq.s32.totalorder %s24, 0
      %p72 = por %p70, %p71
      %s74 = sadd.s32 %s73, 1
      %p77 = scmp.eq.s32.totalorder %s18, 1
      %p78 = scmp.ne.s32.totalorder %s73, %s75
      %p79 = scmp.eq.s32.totalorder %s18, 0
      %p80 = por %p78, %p79
      %p81 = scmp.ne.s32.totalorder %s73, %s75
      %p82 = scmp.eq.s32.totalorder %s23, 1
      %p83 = por %p81, %p82
      %p84 = scmp.ne.s32.totalorder %s75, %s76
      %p85 = scmp.eq.s32.totalorder %s23, 0
      %p86 = por %p84, %p85
      %p87 = scmp.ne.s32.totalorder %s75, %s76
      %p88 = scmp.eq.s32.totalorder %s24, 1
      %p89 = por %p87, %p88
      %p91 = scmp.ne.s32.totalorder %s76, %s90
      %p92 = scmp.eq.s32.totalorder %s24, 0
      %p93 = por %p91, %p92
      %s95 = sadd.s32 %s94, 1
      %p98 = scmp.eq.s32.totalorder %s18, 1
      %p99 = scmp.ne.s32.totalorder %s94, %s96
      %p100 = scmp.eq.s32.totalorder %s18, 0
      %p101 = por %p99, %p100
      %p102 = scmp.ne.s32.totalorder %s94, %s96
      %p103 = scmp.eq.s32.totalorder %s23, 1
      %p104 = por %p102, %p103
      %p105 = scmp.ne.s32.totalorder %s96, %s97
      %p106 = scmp.eq.s32.totalorder %s23, 0
      %p107 = por %p105, %p106
      %p108 = scmp.ne.s32.totalorder %s96, %s97
      %p109 = scmp.eq.s32.totalorder %s24, 1
      %p110 = por %p108, %p109
      %p112 = scmp.ne.s32.totalorder %s97, %s111
      %p113 = scmp.eq.s32.totalorder %s24, 0
      %p114 = por %p112, %p113
      %s116 = sadd.s32 %s115, 1
      %p119 = scmp.eq.s32.totalorder %s18, 1
      %p120 = scmp.ne.s32.totalorder %s115, %s117
      %p121 = scmp.eq.s32.totalorder %s18, 0
      %p122 = por %p120, %p121
      %p123 = scmp.ne.s32.totalorder %s115, %s117
      %p124 = scmp.eq.s32.totalorder %s23, 1
      %p125 = por %p123, %p124
      %p126 = scmp.ne.s32.totalorder %s117, %s118
      %p127 = scmp.eq.s32.totalorder %s23, 0
      %p128 = por %p126, %p127
      %p129 = scmp.ne.s32.totalorder %s117, %s118
      %p130 = scmp.eq.s32.totalorder %s24, 1
      %p131 = por %p129, %p130
      %p133 = scmp.ne.s32.totalorder %s118, %s132
      %p134 = scmp.eq.s32.totalorder %s24, 0
      %p135 = por %p133, %p134
      %s137 = sadd.s32 %s136, 1
      %p140 = scmp.eq.s32.totalorder %s18, 1
      %p141 = scmp.ne.s32.totalorder %s136, %s138
      %p142 = scmp.eq.s32.totalorder %s18, 0
      %p143 = por %p141, %p142
      %p144 = scmp.ne.s32.totalorder %s136, %s138
      %p145 = scmp.eq.s32.totalorder %s23, 1
      %p146 = por %p144, %p145
      %p147 = scmp.ne.s32.totalorder %s138, %s139
      %p148 = scmp.eq.s32.totalorder %s23, 0
      %p149 = por %p147, %p148
      %p150 = scmp.ne.s32.totalorder %s138, %s139
      %p151 = scmp.eq.s32.totalorder %s24, 1
      %p152 = por %p150, %p151
      %p154 = scmp.ne.s32.totalorder %s139, %s153
      %p155 = scmp.eq.s32.totalorder %s24, 0
      %p156 = por %p154, %p155
      %s158 = sadd.s32 %s157, 1
      %p161 = scmp.eq.s32.totalorder %s18, 1
      %p162 = scmp.ne.s32.totalorder %s157, %s159
      %p163 = scmp.eq.s32.totalorder %s18, 0
      %p164 = por %p162, %p163
      %p165 = scmp.ne.s32.totalorder %s157, %s159
      %p166 = scmp.eq.s32.totalorder %s23, 1
      %p167 = por %p165, %p166
      %p168 = scmp.ne.s32.totalorder %s159, %s160
      %p169 = scmp.eq.s32.totalorder %s23, 0
      %p170 = por %p168, %p169
      %p171 = scmp.ne.s32.totalorder %s159, %s160
      %p172 = scmp.eq.s32.totalorder %s24, 1
      %p173 = por %p171, %p172
      %p175 = scmp.ne.s32.totalorder %s160, %s174
      %p176 = scmp.eq.s32.totalorder %s24, 0
      %p177 = por %p175, %p176
      %s179 = sadd.s32 %s178, 1
      %p182 = scmp.eq.s32.totalorder %s18, 1
      %p183 = scmp.ne.s32.totalorder %s178, %s180
      %p184 = scmp.eq.s32.totalorder %s18, 0
      %p185 = por %p183, %p184
      %p186 = scmp.ne.s32.totalorder %s178, %s180
      %p187 = scmp.eq.s32.totalorder %s23, 1
      %p188 = por %p186, %p187
      %p189 = scmp.ne.s32.totalorder %s180, %s181
      %p190 = scmp.eq.s32.totalorder %s23, 0
      %p191 = por %p189, %p190
      %p192 = scmp.ne.s32.totalorder %s180, %s181
      %p193 = scmp.eq.s32.totalorder %s24, 1
      %p194 = por %p192, %p193
      %p196 = scmp.ne.s32.totalorder %s181, %s195
      %p197 = scmp.eq.s32.totalorder %s24, 0
      %p198 = por %p196, %p197
      %s200 = sadd.s32 %s199, 1
      %p203 = scmp.eq.s32.totalorder %s18, 1
      %p204 = scmp.ne.s32.totalorder %s199, %s201
      %p205 = scmp.eq.s32.totalorder %s18, 0
      %p206 = por %p204, %p205
      %p207 = scmp.ne.s32.totalorder %s199, %s201
      %p208 = scmp.eq.s32.totalorder %s23, 1
      %p209 = por %p207, %p208
      %p210 = scmp.ne.s32.totalorder %s201, %s202
      %p211 = scmp.eq.s32.totalorder %s23, 0
      %p212 = por %p210, %p211
      %p213 = scmp.ne.s32.totalorder %s201, %s202
      %p214 = scmp.eq.s32.totalorder %s24, 1
      %p215 = por %p213, %p214
      %p217 = scmp.ne.s32.totalorder %s202, %s216
      %p218 = scmp.eq.s32.totalorder %s24, 0
      %p219 = por %p217, %p218
      %s220 = ssub.s32 %s18, %s25
      %p221 = scmp.eq.s32.totalorder %s220, 0
      %s223 = sadd.s32 %s222, 1
      %s224 = scalar_select %p221, %s222, %s223
      %p227 = pneg %p221
      %p228 = scmp.eq.s32.totalorder %s18, 1
      %p229 = por %p227, %p228
      %p230 = scmp.ne.s32.totalorder %s222, %s225
      %p231 = scmp.eq.s32.totalorder %s18, 0
      %p232 = por %p230, %p231
      %p233 = scmp.ne.s32.totalorder %s222, %s225
      %p234 = scmp.eq.s32.totalorder %s23, 1
      %p235 = por %p233, %p234
      %p236 = scmp.ne.s32.totalorder %s225, %s226
      %p237 = scmp.eq.s32.totalorder %s23, 0
      %p238 = por %p236, %p237
      %p239 = scmp.ne.s32.totalorder %s225, %s226
      %p240 = scmp.eq.s32.totalorder %s24, 1
      %p241 = por %p239, %p240
      %p243 = scmp.ne.s32.totalorder %s226, %s242
      %p244 = scmp.eq.s32.totalorder %s24, 0
      %p245 = por %p243, %p244
      %p246 = scmp.le.s32.totalorder 1, %s18
      %p247 = scmp.lt.s32.totalorder %s18, 3
      %p248 = pnand %p246, %p247
      %p249 = pneg %p248
      // Predicated region
      $region9: #{tpu_custom_call.1} parent=5 // pred_check
        _
      $region10: #{tpu_custom_call.1} parent=5 // pred_check_branch
        %251 = sbr.rel (%p248) target = $region12
      $region11: #{tpu_custom_call.1} parent=5 // pred_region
        %s252 = ssub.s32 %s18, 1
        // Predicated region
        $region13: #{tpu_custom_call.1} parent=11 // pred_check
          %p253 = pneg %p65
        $region14: #{tpu_custom_call.1} parent=11 // pred_check_branch
          %255 = sbr.rel (%p253) target = $region16
        $region15: #{tpu_custom_call.1} parent=11 // pred_region
          _
        $region16: #{tpu_custom_call.1} parent=11 // pred_fallthru
          _
        // Predicated region
        $region17: #{tpu_custom_call.1} parent=11 // pred_check
          %p256 = pneg %p86
        $region18: #{tpu_custom_call.1} parent=11 // pred_check_branch
          %258 = sbr.rel (%p256) target = $region20
        $region19: #{tpu_custom_call.1} parent=11 // pred_region
          _
        $region20: #{tpu_custom_call.1} parent=11 // pred_fallthru
          _
        // Predicated region
        $region21: #{tpu_custom_call.1} parent=11 // pred_check
          %p259 = pneg %p107
        $region22: #{tpu_custom_call.1} parent=11 // pred_check_branch
          %261 = sbr.rel (%p259) target = $region24
        $region23: #{tpu_custom_call.1} parent=11 // pred_region
          _
        $region24: #{tpu_custom_call.1} parent=11 // pred_fallthru
          _
        // Predicated region
        $region25: #{tpu_custom_call.1} parent=11 // pred_check
          %p262 = pneg %p128
        $region26: #{tpu_custom_call.1} parent=11 // pred_check_branch
          %264 = sbr.rel (%p262) target = $region28
        $region27: #{tpu_custom_call.1} parent=11 // pred_region
          _
        $region28: #{tpu_custom_call.1} parent=11 // pred_fallthru
          _
        // Predicated region
        $region29: #{tpu_custom_call.1} parent=11 // pred_check
          %p265 = pneg %p149
        $region30: #{tpu_custom_call.1} parent=11 // pred_check_branch
          %267 = sbr.rel (%p265) target = $region32
        $region31: #{tpu_custom_call.1} parent=11 // pred_region
          _
        $region32: #{tpu_custom_call.1} parent=11 // pred_fallthru
          _
        // Predicated region
        $region33: #{tpu_custom_call.1} parent=11 // pred_check
          %p268 = pneg %p170
        $region34: #{tpu_custom_call.1} parent=11 // pred_check_branch
          %270 = sbr.rel (%p268) target = $region36
        $region35: #{tpu_custom_call.1} parent=11 // pred_region
          _
        $region36: #{tpu_custom_call.1} parent=11 // pred_fallthru
          _
        // Predicated region
        $region37: #{tpu_custom_call.1} parent=11 // pred_check
          %p271 = pneg %p191
        $region38: #{tpu_custom_call.1} parent=11 // pred_check_branch
          %273 = sbr.rel (%p271) target = $region40
        $region39: #{tpu_custom_call.1} parent=11 // pred_region
          _
        $region40: #{tpu_custom_call.1} parent=11 // pred_fallthru
          _
        // Predicated region
        $region41: #{tpu_custom_call.1} parent=11 // pred_check
          %p274 = pneg %p212
        $region42: #{tpu_custom_call.1} parent=11 // pred_check_branch
          %276 = sbr.rel (%p274) target = $region44
        $region43: #{tpu_custom_call.1} parent=11 // pred_region
          _
        $region44: #{tpu_custom_call.1} parent=11 // pred_fallthru
          _
      $region12: #{tpu_custom_call.1} parent=5 // pred_fallthru
        _
      %p277 = scmp.lt.s32.totalorder %s18, 2
      // Predicated region
      $region45: #{tpu_custom_call.1} parent=5 // pred_check
        %p278 = pneg %p277
      $region46: #{tpu_custom_call.1} parent=5 // pred_check_branch
        %280 = sbr.rel (%p278) target = $region48
      $region47: #{tpu_custom_call.1} parent=5 // pred_region
        // Predicated region
        $region49: #{tpu_custom_call.1} parent=47 // pred_check
          %p281 = pneg %p38
        $region50: #{tpu_custom_call.1} parent=47 // pred_check_branch
          %283 = sbr.rel (%p281) target = $region52
        $region51: #{tpu_custom_call.1} parent=47 // pred_region
          %p284 = scmp.lt.s32.totalorder %s18, 1
          %s285 = scalar_select %p284, %s18, 1
          %s286 = smul.addr %s285, 8
          %s287 = scalar_lea.vmem %s0, %s286
        $region52: #{tpu_custom_call.1} parent=47 // pred_fallthru
          _
      $region48: #{tpu_custom_call.1} parent=5 // pred_fallthru
        _
      %p288 = scmp.le.s32.totalorder 1, %s18
      %p289 = scmp.lt.s32.totalorder %s18, 3
      %p290 = pnand %p288, %p289
      %p291 = pneg %p290
      // Predicated region
      $region53: #{tpu_custom_call.1} parent=5 // pred_check
        _
      $region54: #{tpu_custom_call.1} parent=5 // pred_check_branch
        %293 = sbr.rel (%p290) target = $region56
      $region55: #{tpu_custom_call.1} parent=5 // pred_region
        %s294 = ssub.s32 %s18, 1
        %p295 = scmp.lt.s32.totalorder %s23, 1
        %s296 = scalar_select %p295, %s23, 1
        %s297 = smul.addr %s296, 8
        %s298 = scalar_lea.vmem %s0, %s297
        %p299 = pneg %p44
        %p300 = pneg %p41
        %p301 = pneg %p65
        %p302 = pneg %p62
        %p303 = pneg %p86
        %p304 = pneg %p83
        %p305 = pneg %p107
        %p306 = pneg %p104
        %p307 = pneg %p128
        %p308 = pneg %p125
        %p309 = pneg %p149
        %p310 = pneg %p146
        %p311 = pneg %p170
        %p312 = pneg %p167
        %p313 = pneg %p191
        %p314 = pneg %p188
        %p315 = pneg %p212
        %p316 = pneg %p209
        %p317 = pneg %p238
        %p318 = pneg %p235
        %s319 = sand.u32 %s225, 1
        %s320 = scalar_lea.sflag [#allocation3], %s319
        %s321 = sand.u32 %s225, 1
        %s322 = smul.addr %s321, 8
        %s323 = scalar_lea.vmem [#allocation2], %s322
        %p324 = scmp.lt.s32.totalorder %s23, 1
        %s325 = scalar_select %p324, %s23, 1
        %s326 = smul.addr %s325, 8
        %s327 = scalar_lea.vmem %s0, %s326
        %v329 = vld [vmem:[%s327] sm:$0xff]
        %v330 = vld [vmem:[%s1] sm:$0x1]
        %v331 = vld [vmem:[%s2] sm:$0x1]
        %vm332 = vcmask 261120
        %v333 = vsel %vm332, %v329, 0.0
        %334 = vadd.xlane.f32.xlu0 %v333
        %v335 = vpop.xlane.xlu0 %334
        %v336 = vrcp.pop 32.0
        %v337 = vmul.f32 %v335, %v336
        %v338 = vsub.f32 %v329, %v337
        %v339 = vmul.f32 %v338, %v338
        %v340 = vsel %vm332, %v339, 0.0
        %341 = vadd.xlane.f32.xlu0 %v340
        %v342 = vpop.xlane.xlu0 %341
        %v343 = vmul.f32 %v342, %v336
        %v344 = vadd.f32 %v343, 1e-06
        %v345 = vrsqrt.pop %v344
        %v346 = vmul.f32 %v338, %v345
        %v348 = vlaneseq
        %v349 = vshrl.u32 %v348, 7
        %v350 = vsub.s32 0, %v349
        %v351 = vrot.slane %v330, %v350
        %v353 = vmul.f32 %v346, %v351
        %v355 = vlaneseq
        %v356 = vshrl.u32 %v355, 7
        %v357 = vsub.s32 0, %v356
        %v358 = vrot.slane %v331, %v357
        %v360 = vadd.f32 %v353, %v358
        %v361 = vpack.c.bf16 %v360, %v360
        %v362 = vld [vmem:[%s3] sm:$0xf]
        %v363 = vld [vmem:[%s3 + $0x4] sm:$0xf]
        %v364 = vld [vmem:[%s3 + $0x8] sm:$0xf]
        %v365 = vld [vmem:[%s3 + $0xc] sm:$0xf]
        %v366 = vld [vmem:[%s4] sm:$0x1]
        %v368 = vlaneseq
        %v369 = vshrl.u32 %v368, 7
        %v370 = vsub.s32 0, %v369
        %v371 = vrot.slane %v366, %v370
        %v377 = vunpack.c.l.b16 %v362
        %v378 = vunpack.c.l.b16 %v363
        %v379 = vunpack.c.l.b16 %v364
        %v380 = vunpack.c.l.b16 %v365
        %v381 = vpack.c.b16 %v378, %v377
        %v382 = vpack.c.b16 %v380, %v379
        %v386 = vsel %vm332, %v361, 0
        %388 = vmatprep.subr.bf16.mxu0 0
        %389 = vmatpush1.bf16.msra.mxu0 %v381
        %390 = vmatprep.subr.bf16.mxu0 0
        %391 = vmatpush1.bf16.msra.mxu0 %v382
        %392 = vmatprep.subr.bf16.mxu0 0
        %393 = vmatpush1.bf16.msra.mxu0 0
        %394 = vmatprep.subr.bf16.mxu0 0
        %395 = vmatpush1.bf16.msra.mxu0 0
        %396 = vmatprep.subr.bf16.mxu0 0
        %397 = vmatpush1.bf16.msra.mxu0 0
        %398 = vmatprep.subr.bf16.mxu0 0
        %399 = vmatpush1.bf16.msra.mxu0 0
        %400 = vmatprep.subr.bf16.mxu0 0
        %401 = vmatpush1.bf16.msra.mxu0 0
        %402 = vmatprep.subr.bf16.mxu0 0
        %403 = vmatpush1.bf16.msra.mxu0 0
        %404 = vmatprep.subr.bf16.mxu0 0
        %405 = vmatpush1.bf16.msra.mxu0 0
        %406 = vmatprep.subr.bf16.mxu0 0
        %407 = vmatpush1.bf16.msra.mxu0 0
        %408 = vmatprep.subr.bf16.mxu0 0
        %409 = vmatpush1.bf16.msra.mxu0 0
        %410 = vmatprep.subr.bf16.mxu0 0
        %411 = vmatpush1.bf16.msra.mxu0 0
        %412 = vmatprep.subr.bf16.mxu0 0
        %413 = vmatpush1.bf16.msra.mxu0 0
        %414 = vmatprep.subr.bf16.mxu0 0
        %415 = vmatpush1.bf16.msra.mxu0 0
        %416 = vmatprep.subr.bf16.mxu0 0
        %417 = vmatpush1.bf16.msra.mxu0 0
        %418 = vmatprep.subr.bf16.mxu0 0
        %419 = vmatpush1.bf16.msra.mxu0 0
        %420 = vmatprep.mubr.bf16.mxu0 0
        %421 = vmatmul.mubr.bf16.gmra.mrb[0].mxu0 %v386
        %v422 = vpop.f32.mrb[0].mxu0
        %v423 = vadd.f32 %v371, %v422
        %v424 = vpop.f32.mrb[0].mxu0
        %v425 = vpop.f32.mrb[0].mxu0
        %v426 = vpop.f32.mrb[0].mxu0
        %427 = vdwg.mxu0
        %v428 = vpack.c.bf16 %v423, %v423
        %430 = vrot.lane.b32.xlu0 %v428, 96
        %v431 = vpop.permute.xlu0 %430
        %vm432 = vcmask 64512
        %v434 = vsel %vm432, %v428, 0
        %v437 = vsel %vm432, %v431, 0
        %439 = vmatprep.subr.bf16.mxu0 0
        %440 = vmatpush1.bf16.xpose.msra.mxu0 %v437
        %441 = vmatprep.subr.bf16.mxu0 0
        %442 = vmatpush1.bf16.xpose.msra.mxu0 0
        %443 = vmatprep.subr.bf16.mxu0 0
        %444 = vmatpush1.bf16.xpose.msra.mxu0 0
        %445 = vmatprep.subr.bf16.mxu0 0
        %446 = vmatpush1.bf16.xpose.msra.mxu0 0
        %447 = vmatprep.subr.bf16.mxu0 0
        %448 = vmatpush1.bf16.xpose.msra.mxu0 0
        %449 = vmatprep.subr.bf16.mxu0 0
        %450 = vmatpush1.bf16.xpose.msra.mxu0 0
        %451 = vmatprep.subr.bf16.mxu0 0
        %452 = vmatpush1.bf16.xpose.msra.mxu0 0
        %453 = vmatprep.subr.bf16.mxu0 0
        %454 = vmatpush1.bf16.xpose.msra.mxu0 0
        %455 = vmatprep.subr.bf16.mxu0 0
        %456 = vmatpush1.bf16.xpose.msra.mxu0 0
        %457 = vmatprep.subr.bf16.mxu0 0
        %458 = vmatpush1.bf16.xpose.msra.mxu0 0
        %459 = vmatprep.subr.bf16.mxu0 0
        %460 = vmatpush1.bf16.xpose.msra.mxu0 0
        %461 = vmatprep.subr.bf16.mxu0 0
        %462 = vmatpush1.bf16.xpose.msra.mxu0 0
        %463 = vmatprep.subr.bf16.mxu0 0
        %464 = vmatpush1.bf16.xpose.msra.mxu0 0
        %465 = vmatprep.subr.bf16.mxu0 0
        %466 = vmatpush1.bf16.xpose.msra.mxu0 0
        %467 = vmatprep.subr.bf16.mxu0 0
        %468 = vmatpush1.bf16.xpose.msra.mxu0 0
        %469 = vmatprep.subr.bf16.mxu0 0
        %470 = vmatpush1.bf16.xpose.msra.mxu0 0
        %471 = vmatprep.mubr.bf16.mxu0 0
        %472 = vmatmul.mubr.bf16.gmra.mrb[0].mxu0 %v434
        %v473 = vpop.f32.mrb[0].mxu0
        %v474 = vadd.f32 0.0, %v473
        %v475 = vpop.f32.mrb[0].mxu0
        %v476 = vpop.f32.mrb[0].mxu0
        %v477 = vpop.f32.mrb[0].mxu0
        %478 = vdwg.mxu0
        %v479 = vsel %vm432, %v474, -inf
        %480 = vmax.xlane.f32.xlu0 %v479
        %v481 = vpop.xlane.xlu0 %480
        %v482 = vsub.f32 %v474, %v481
        %v483 = vmul.f32 %v482, 1.442695
        %v484 = vpow.pop %v483
        %v485 = vsel %vm432, %v484, 0.0
        %486 = vadd.xlane.f32.xlu0 %v485
        %v487 = vpop.xlane.xlu0 %486
        %v488 = vrcp.pop %v487
        %v489 = vmul.f32 %v484, %v488
        %v490 = vpack.c.bf16 %v489, %v489
        %491 = vrot.lane.b32.xlu0 %v428, 64
        %v492 = vpop.permute.xlu0 %491
        %v494 = vsel %vm432, %v490, 0
        %vm496 = vcmask 1043456
        %v498 = vsel %vm496, %v492, 0
        %500 = vmatprep.subr.bf16.mxu0 0
        %501 = vmatpush1.bf16.msra.mxu0 %v498
        %502 = vmatprep.subr.bf16.mxu0 0
        %503 = vmatpush1.bf16.msra.mxu0 0
        %504 = vmatprep.subr.bf16.mxu0 0
        %505 = vmatpush1.bf16.msra.mxu0 0
        %506 = vmatprep.subr.bf16.mxu0 0
        %507 = vmatpush1.bf16.msra.mxu0 0
        %508 = vmatprep.subr.bf16.mxu0 0
        %509 = vmatpush1.bf16.msra.mxu0 0
        %510 = vmatprep.subr.bf16.mxu0 0
        %511 = vmatpush1.bf16.msra.mxu0 0
        %512 = vmatprep.subr.bf16.mxu0 0
        %513 = vmatpush1.bf16.msra.mxu0 0
        %514 = vmatprep.subr.bf16.mxu0 0
        %515 = vmatpush1.bf16.msra.mxu0 0
        %516 = vmatprep.subr.bf16.mxu0 0
        %517 = vmatpush1.bf16.msra.mxu0 0
        %518 = vmatprep.subr.bf16.mxu0 0
        %519 = vmatpush1.bf16.msra.mxu0 0
        %520 = vmatprep.subr.bf16.mxu0 0
        %521 = vmatpush1.bf16.msra.mxu0 0
        %522 = vmatprep.subr.bf16.mxu0 0
        %523 = vmatpush1.bf16.msra.mxu0 0
        %524 = vmatprep.subr.bf16.mxu0 0
        %525 = vmatpush1.bf16.msra.mxu0 0
        %526 = vmatprep.subr.bf16.mxu0 0
        %527 = vmatpush1.bf16.msra.mxu0 0
        %528 = vmatprep.subr.bf16.mxu0 0
        %529 = vmatpush1.bf16.msra.mxu0 0
        %530 = vmatprep.subr.bf16.mxu0 0
        %531 = vmatpush1.bf16.msra.mxu0 0
        %532 = vmatprep.mubr.bf16.mxu0 0
        %533 = vmatmul.mubr.bf16.gmra.mrb[0].mxu0 %v494
        %v534 = vpop.f32.mrb[0].mxu0
        %v535 = vadd.f32 0.0, %v534
        %v536 = vpop.f32.mrb[0].mxu0
        %v537 = vpop.f32.mrb[0].mxu0
        %v538 = vpop.f32.mrb[0].mxu0
        %539 = vdwg.mxu0
        %540 = vrot.lane.b32.xlu0 %v428, 120
        %v541 = vpop.permute.xlu0 %540
        %542 = vrot.lane.b32.xlu0 %v428, 88
        %v543 = vpop.permute.xlu0 %542
        %v545 = vsel %vm432, %v541, 0
        %v548 = vsel %vm432, %v543, 0
        %550 = vmatprep.subr.bf16.mxu0 0
        %551 = vmatpush1.bf16.xpose.msra.mxu0 %v548
        %552 = vmatprep.subr.bf16.mxu0 0
        %553 = vmatpush1.bf16.xpose.msra.mxu0 0
        %554 = vmatprep.subr.bf16.mxu0 0
        %555 = vmatpush1.bf16.xpose.msra.mxu0 0
        %556 = vmatprep.subr.bf16.mxu0 0
        %557 = vmatpush1.bf16.xpose.msra.mxu0 0
        %558 = vmatprep.subr.bf16.mxu0 0
        %559 = vmatpush1.bf16.xpose.msra.mxu0 0
        %560 = vmatprep.subr.bf16.mxu0 0
        %561 = vmatpush1.bf16.xpose.msra.mxu0 0
        %562 = vmatprep.subr.bf16.mxu0 0
        %563 = vmatpush1.bf16.xpose.msra.mxu0 0
        %564 = vmatprep.subr.bf16.mxu0 0
        %565 = vmatpush1.bf16.xpose.msra.mxu0 0
        %566 = vmatprep.subr.bf16.mxu0 0
        %567 = vmatpush1.bf16.xpose.msra.mxu0 0
        %568 = vmatprep.subr.bf16.mxu0 0
        %569 = vmatpush1.bf16.xpose.msra.mxu0 0
        %570 = vmatprep.subr.bf16.mxu0 0
        %571 = vmatpush1.bf16.xpose.msra.mxu0 0
        %572 = vmatprep.subr.bf16.mxu0 0
        %573 = vmatpush1.bf16.xpose.msra.mxu0 0
        %574 = vmatprep.subr.bf16.mxu0 0
        %575 = vmatpush1.bf16.xpose.msra.mxu0 0
        %576 = vmatprep.subr.bf16.mxu0 0
        %577 = vmatpush1.bf16.xpose.msra.mxu0 0
        %578 = vmatprep.subr.bf16.mxu0 0
        %579 = vmatpush1.bf16.xpose.msra.mxu0 0
        %580 = vmatprep.subr.bf16.mxu0 0
        %581 = vmatpush1.bf16.xpose.msra.mxu0 0
        %582 = vmatprep.mubr.bf16.mxu0 0
        %583 = vmatmul.mubr.bf16.gmra.mrb[0].mxu0 %v545
        %v584 = vpop.f32.mrb[0].mxu0
        %v585 = vadd.f32 0.0, %v584
        %v586 = vpop.f32.mrb[0].mxu0
        %v587 = vpop.f32.mrb[0].mxu0
        %v588 = vpop.f32.mrb[0].mxu0
        %589 = vdwg.mxu0
        %v590 = vsel %vm432, %v585, -inf
        %591 = vmax.xlane.f32.xlu0 %v590
        %v592 = vpop.xlane.xlu0 %591
        %v593 = vsub.f32 %v585, %v592
        %v594 = vmul.f32 %v593, 1.442695
        %v595 = vpow.pop %v594
        %v596 = vsel %vm432, %v595, 0.0
        %597 = vadd.xlane.f32.xlu0 %v596
        %v598 = vpop.xlane.xlu0 %597
        %v599 = vrcp.pop %v598
        %v600 = vmul.f32 %v595, %v599
        %v601 = vpack.c.bf16 %v600, %v600
        %602 = vrot.lane.b32.xlu0 %v428, 56
        %v603 = vpop.permute.xlu0 %602
        %v605 = vsel %vm432, %v601, 0
        %v608 = vsel %vm496, %v603, 0
        %610 = vmatprep.subr.bf16.mxu0 0
        %611 = vmatpush1.bf16.msra.mxu0 %v608
        %612 = vmatprep.subr.bf16.mxu0 0
        %613 = vmatpush1.bf16.msra.mxu0 0
        %614 = vmatprep.subr.bf16.mxu0 0
        %615 = vmatpush1.bf16.msra.mxu0 0
        %616 = vmatprep.subr.bf16.mxu0 0
        %617 = vmatpush1.bf16.msra.mxu0 0
        %618 = vmatprep.subr.bf16.mxu0 0
        %619 = vmatpush1.bf16.msra.mxu0 0
        %620 = vmatprep.subr.bf16.mxu0 0
        %621 = vmatpush1.bf16.msra.mxu0 0
        %622 = vmatprep.subr.bf16.mxu0 0
        %623 = vmatpush1.bf16.msra.mxu0 0
        %624 = vmatprep.subr.bf16.mxu0 0
        %625 = vmatpush1.bf16.msra.mxu0 0
        %626 = vmatprep.subr.bf16.mxu0 0
        %627 = vmatpush1.bf16.msra.mxu0 0
        %628 = vmatprep.subr.bf16.mxu0 0
        %629 = vmatpush1.bf16.msra.mxu0 0
        %630 = vmatprep.subr.bf16.mxu0 0
        %631 = vmatpush1.bf16.msra.mxu0 0
        %632 = vmatprep.subr.bf16.mxu0 0
        %633 = vmatpush1.bf16.msra.mxu0 0
        %634 = vmatprep.subr.bf16.mxu0 0
        %635 = vmatpush1.bf16.msra.mxu0 0
        %636 = vmatprep.subr.bf16.mxu0 0
        %637 = vmatpush1.bf16.msra.mxu0 0
        %638 = vmatprep.subr.bf16.mxu0 0
        %639 = vmatpush1.bf16.msra.mxu0 0
        %640 = vmatprep.subr.bf16.mxu0 0
        %641 = vmatpush1.bf16.msra.mxu0 0
        %642 = vmatprep.mubr.bf16.mxu0 0
        %643 = vmatmul.mubr.bf16.gmra.mrb[0].mxu0 %v605
        %v644 = vpop.f32.mrb[0].mxu0
        %v645 = vadd.f32 0.0, %v644
        %v646 = vpop.f32.mrb[0].mxu0
        %v647 = vpop.f32.mrb[0].mxu0
        %v648 = vpop.f32.mrb[0].mxu0
        %649 = vdwg.mxu0
        %650 = vrot.lane.b32.xlu0 %v428, 112
        %v651 = vpop.permute.xlu0 %650
        %652 = vrot.lane.b32.xlu0 %v428, 80
        %v653 = vpop.permute.xlu0 %652
        %v655 = vsel %vm432, %v651, 0
        %v658 = vsel %vm432, %v653, 0
        %660 = vmatprep.subr.bf16.mxu0 0
        %661 = vmatpush1.bf16.xpose.msra.mxu0 %v658
        %662 = vmatprep.subr.bf16.mxu0 0
        %663 = vmatpush1.bf16.xpose.msra.mxu0 0
        %664 = vmatprep.subr.bf16.mxu0 0
        %665 = vmatpush1.bf16.xpose.msra.mxu0 0
        %666 = vmatprep.subr.bf16.mxu0 0
        %667 = vmatpush1.bf16.xpose.msra.mxu0 0
        %668 = vmatprep.subr.bf16.mxu0 0
        %669 = vmatpush1.bf16.xpose.msra.mxu0 0
        %670 = vmatprep.subr.bf16.mxu0 0
        %671 = vmatpush1.bf16.xpose.msra.mxu0 0
        %672 = vmatprep.subr.bf16.mxu0 0
        %673 = vmatpush1.bf16.xpose.msra.mxu0 0
        %674 = vmatprep.subr.bf16.mxu0 0
        %675 = vmatpush1.bf16.xpose.msra.mxu0 0
        %676 = vmatprep.subr.bf16.mxu0 0
        %677 = vmatpush1.bf16.xpose.msra.mxu0 0
        %678 = vmatprep.subr.bf16.mxu0 0
        %679 = vmatpush1.bf16.xpose.msra.mxu0 0
        %680 = vmatprep.subr.bf16.mxu0 0
        %681 = vmatpush1.bf16.xpose.msra.mxu0 0
        %682 = vmatprep.subr.bf16.mxu0 0
        %683 = vmatpush1.bf16.xpose.msra.mxu0 0
        %684 = vmatprep.subr.bf16.mxu0 0
        %685 = vmatpush1.bf16.xpose.msra.mxu0 0
        %686 = vmatprep.subr.bf16.mxu0 0
        %687 = vmatpush1.bf16.xpose.msra.mxu0 0
        %688 = vmatprep.subr.bf16.mxu0 0
        %689 = vmatpush1.bf16.xpose.msra.mxu0 0
        %690 = vmatprep.subr.bf16.mxu0 0
        %691 = vmatpush1.bf16.xpose.msra.mxu0 0
        %692 = vmatprep.mubr.bf16.mxu0 0
        %693 = vmatmul.mubr.bf16.gmra.mrb[0].mxu0 %v655
        %v694 = vpop.f32.mrb[0].mxu0
        %v695 = vadd.f32 0.0, %v694
        %v696 = vpop.f32.mrb[0].mxu0
        %v697 = vpop.f32.mrb[0].mxu0
        %v698 = vpop.f32.mrb[0].mxu0
        %699 = vdwg.mxu0
        %v700 = vsel %vm432, %v695, -inf
        %701 = vmax.xlane.f32.xlu0 %v700
        %v702 = vpop.xlane.xlu0 %701
        %v703 = vsub.f32 %v695, %v702
        %v704 = vmul.f32 %v703, 1.442695
        %v705 = vpow.pop %v704
        %v706 = vsel %vm432, %v705, 0.0
        %707 = vadd.xlane.f32.xlu0 %v706
        %v708 = vpop.xlane.xlu0 %707
        %v709 = vrcp.pop %v708
        %v710 = vmul.f32 %v705, %v709
        %v711 = vpack.c.bf16 %v710, %v710
        %712 = vrot.lane.b32.xlu0 %v428, 48
        %v713 = vpop.permute.xlu0 %712
        %v715 = vsel %vm432, %v711, 0
        %v718 = vsel %vm496, %v713, 0
        %720 = vmatprep.subr.bf16.mxu0 0
        %721 = vmatpush1.bf16.msra.mxu0 %v718
        %722 = vmatprep.subr.bf16.mxu0 0
        %723 = vmatpush1.bf16.msra.mxu0 0
        %724 = vmatprep.subr.bf16.mxu0 0
        %725 = vmatpush1.bf16.msra.mxu0 0
        %726 = vmatprep.subr.bf16.mxu0 0
        %727 = vmatpush1.bf16.msra.mxu0 0
        %728 = vmatprep.subr.bf16.mxu0 0
        %729 = vmatpush1.bf16.msra.mxu0 0
        %730 = vmatprep.subr.bf16.mxu0 0
        %731 = vmatpush1.bf16.msra.mxu0 0
        %732 = vmatprep.subr.bf16.mxu0 0
        %733 = vmatpush1.bf16.msra.mxu0 0
        %734 = vmatprep.subr.bf16.mxu0 0
        %735 = vmatpush1.bf16.msra.mxu0 0
        %736 = vmatprep.subr.bf16.mxu0 0
        %737 = vmatpush1.bf16.msra.mxu0 0
        %738 = vmatprep.subr.bf16.mxu0 0
        %739 = vmatpush1.bf16.msra.mxu0 0
        %740 = vmatprep.subr.bf16.mxu0 0
        %741 = vmatpush1.bf16.msra.mxu0 0
        %742 = vmatprep.subr.bf16.mxu0 0
        %743 = vmatpush1.bf16.msra.mxu0 0
        %744 = vmatprep.subr.bf16.mxu0 0
        %745 = vmatpush1.bf16.msra.mxu0 0
        %746 = vmatprep.subr.bf16.mxu0 0
        %747 = vmatpush1.bf16.msra.mxu0 0
        %748 = vmatprep.subr.bf16.mxu0 0
        %749 = vmatpush1.bf16.msra.mxu0 0
        %750 = vmatprep.subr.bf16.mxu0 0
        %751 = vmatpush1.bf16.msra.mxu0 0
        %752 = vmatprep.mubr.bf16.mxu0 0
        %753 = vmatmul.mubr.bf16.gmra.mrb[0].mxu0 %v715
        %v754 = vpop.f32.mrb[0].mxu0
        %v755 = vadd.f32 0.0, %v754
        %v756 = vpop.f32.mrb[0].mxu0
        %v757 = vpop.f32.mrb[0].mxu0
        %v758 = vpop.f32.mrb[0].mxu0
        %759 = vdwg.mxu0
        %760 = vrot.lane.b32.xlu0 %v428, 104
        %v761 = vpop.permute.xlu0 %760
        %762 = vrot.lane.b32.xlu0 %v428, 72
        %v763 = vpop.permute.xlu0 %762
        %v765 = vsel %vm432, %v761, 0
        %v768 = vsel %vm432, %v763, 0
        %770 = vmatprep.subr.bf16.mxu0 0
        %771 = vmatpush1.bf16.xpose.msra.mxu0 %v768
        %772 = vmatprep.subr.bf16.mxu0 0
        %773 = vmatpush1.bf16.xpose.msra.mxu0 0
        %774 = vmatprep.subr.bf16.mxu0 0
        %775 = vmatpush1.bf16.xpose.msra.mxu0 0
        %776 = vmatprep.subr.bf16.mxu0 0
        %777 = vmatpush1.bf16.xpose.msra.mxu0 0
        %778 = vmatprep.subr.bf16.mxu0 0
        %779 = vmatpush1.bf16.xpose.msra.mxu0 0
        %780 = vmatprep.subr.bf16.mxu0 0
        %781 = vmatpush1.bf16.xpose.msra.mxu0 0
        %782 = vmatprep.subr.bf16.mxu0 0
        %783 = vmatpush1.bf16.xpose.msra.mxu0 0
        %784 = vmatprep.subr.bf16.mxu0 0
        %785 = vmatpush1.bf16.xpose.msra.mxu0 0
        %786 = vmatprep.subr.bf16.mxu0 0
        %787 = vmatpush1.bf16.xpose.msra.mxu0 0
        %788 = vmatprep.subr.bf16.mxu0 0
        %789 = vmatpush1.bf16.xpose.msra.mxu0 0
        %790 = vmatprep.subr.bf16.mxu0 0
        %791 = vmatpush1.bf16.xpose.msra.mxu0 0
        %792 = vmatprep.subr.bf16.mxu0 0
        %793 = vmatpush1.bf16.xpose.msra.mxu0 0
        %794 = vmatprep.subr.bf16.mxu0 0
        %795 = vmatpush1.bf16.xpose.msra.mxu0 0
        %796 = vmatprep.subr.bf16.mxu0 0
        %797 = vmatpush1.bf16.xpose.msra.mxu0 0
        %798 = vmatprep.subr.bf16.mxu0 0
        %799 = vmatpush1.bf16.xpose.msra.mxu0 0
        %800 = vmatprep.subr.bf16.mxu0 0
        %801 = vmatpush1.bf16.xpose.msra.mxu0 0
        %802 = vmatprep.mubr.bf16.mxu0 0
        %803 = vmatmul.mubr.bf16.gmra.mrb[0].mxu0 %v765
        %v804 = vpop.f32.mrb[0].mxu0
        %v805 = vadd.f32 0.0, %v804
        %v806 = vpop.f32.mrb[0].mxu0
        %v807 = vpop.f32.mrb[0].mxu0
        %v808 = vpop.f32.mrb[0].mxu0
        %809 = vdwg.mxu0
        %v810 = vsel %vm432, %v805, -inf
        %811 = vmax.xlane.f32.xlu0 %v810
        %v812 = vpop.xlane.xlu0 %811
        %v813 = vsub.f32 %v805, %v812
        %v814 = vmul.f32 %v813, 1.442695
        %v815 = vpow.pop %v814
        %v816 = vsel %vm432, %v815, 0.0
        %817 = vadd.xlane.f32.xlu0 %v816
        %v818 = vpop.xlane.xlu0 %817
        %v819 = vrcp.pop %v818
        %v820 = vmul.f32 %v815, %v819
        %v821 = vpack.c.bf16 %v820, %v820
        %822 = vrot.lane.b32.xlu0 %v428, 40
        %v823 = vpop.permute.xlu0 %822
        %v825 = vsel %vm432, %v821, 0
        %v828 = vsel %vm496, %v823, 0
        %830 = vmatprep.subr.bf16.mxu0 0
        %831 = vmatpush1.bf16.msra.mxu0 %v828
        %832 = vmatprep.subr.bf16.mxu0 0
        %833 = vmatpush1.bf16.msra.mxu0 0
        %834 = vmatprep.subr.bf16.mxu0 0
        %835 = vmatpush1.bf16.msra.mxu0 0
        %836 = vmatprep.subr.bf16.mxu0 0
        %837 = vmatpush1.bf16.msra.mxu0 0
        %838 = vmatprep.subr.bf16.mxu0 0
        %839 = vmatpush1.bf16.msra.mxu0 0
        %840 = vmatprep.subr.bf16.mxu0 0
        %841 = vmatpush1.bf16.msra.mxu0 0
        %842 = vmatprep.subr.bf16.mxu0 0
        %843 = vmatpush1.bf16.msra.mxu0 0
        %844 = vmatprep.subr.bf16.mxu0 0
        %845 = vmatpush1.bf16.msra.mxu0 0
        %846 = vmatprep.subr.bf16.mxu0 0
        %847 = vmatpush1.bf16.msra.mxu0 0
        %848 = vmatprep.subr.bf16.mxu0 0
        %849 = vmatpush1.bf16.msra.mxu0 0
        %850 = vmatprep.subr.bf16.mxu0 0
        %851 = vmatpush1.bf16.msra.mxu0 0
        %852 = vmatprep.subr.bf16.mxu0 0
        %853 = vmatpush1.bf16.msra.mxu0 0
        %854 = vmatprep.subr.bf16.mxu0 0
        %855 = vmatpush1.bf16.msra.mxu0 0
        %856 = vmatprep.subr.bf16.mxu0 0
        %857 = vmatpush1.bf16.msra.mxu0 0
        %858 = vmatprep.subr.bf16.mxu0 0
        %859 = vmatpush1.bf16.msra.mxu0 0
        %860 = vmatprep.subr.bf16.mxu0 0
        %861 = vmatpush1.bf16.msra.mxu0 0
        %862 = vmatprep.mubr.bf16.mxu0 0
        %863 = vmatmul.mubr.bf16.gmra.mrb[0].mxu0 %v825
        %v864 = vpop.f32.mrb[0].mxu0
        %v865 = vadd.f32 0.0, %v864
        %v866 = vpop.f32.mrb[0].mxu0
        %v867 = vpop.f32.mrb[0].mxu0
        %v868 = vpop.f32.mrb[0].mxu0
        %869 = vdwg.mxu0
        %871 = vrot.lane.b32.xlu0 %v645, 8
        %v872 = vpop.permute.xlu0 %871
        %875 = vrot.lane.b32.xlu0 %v755, 16
        %v876 = vpop.permute.xlu0 %875
        %879 = vrot.lane.b32.xlu0 %v865, 24
        %v880 = vpop.permute.xlu0 %879
        %v882 = vsel %vm432, %v535, %v872
        %vm883 = vcmask 130048
        %v884 = vsel %vm883, %v882, %v876
        %vm885 = vcmask 195584
        %v886 = vsel %vm885, %v884, %v880
        %v887 = vadd.f32 %v329, %v886
        %v888 = vsel %vm332, %v887, 0.0
        %889 = vadd.xlane.f32.xlu0 %v888
        %v890 = vpop.xlane.xlu0 %889
        %v891 = vmul.f32 %v890, %v336
        %v892 = vsub.f32 %v887, %v891
        %v893 = vmul.f32 %v892, %v892
        %v894 = vsel %vm332, %v893, 0.0
        %895 = vadd.xlane.f32.xlu0 %v894
        %v896 = vpop.xlane.xlu0 %895
        %v897 = vmul.f32 %v896, %v336
        %v898 = vadd.f32 %v897, 1e-06
        %v899 = vrsqrt.pop %v898
        %v900 = vmul.f32 %v892, %v899
        %v901 = vmul.f32 %v900, %v351
        %v902 = vadd.f32 %v901, %v358
        %v903 = vpack.c.bf16 %v902, %v902
        %v904 = vld [vmem:[%s5] sm:$0xf]
        %v905 = vld [vmem:[%s5 + $0x4] sm:$0xf]
        %v906 = vld [vmem:[%s5 + $0x8] sm:$0xf]
        %v907 = vld [vmem:[%s5 + $0xc] sm:$0xf]
        %v908 = vld [vmem:[%s6] sm:$0x1]
        %v910 = vlaneseq
        %v911 = vshrl.u32 %v910, 7
        %v912 = vsub.s32 0, %v911
        %v913 = vrot.slane %v908, %v912
        %v919 = vunpack.c.l.b16 %v904
        %v920 = vunpack.c.l.b16 %v905
        %v921 = vunpack.c.l.b16 %v906
        %v922 = vunpack.c.l.b16 %v907
        %v923 = vpack.c.b16 %v920, %v919
        %v924 = vpack.c.b16 %v922, %v921
        %v928 = vsel %vm332, %v903, 0
        %930 = vmatprep.subr.bf16.mxu0 0
        %931 = vmatpush1.bf16.msra.mxu0 %v923
        %932 = vmatprep.subr.bf16.mxu0 0
        %933 = vmatpush1.bf16.msra.mxu0 %v924
        %934 = vmatprep.subr.bf16.mxu0 0
        %935 = vmatpush1.bf16.msra.mxu0 0
        %936 = vmatprep.subr.bf16.mxu0 0
        %937 = vmatpush1.bf16.msra.mxu0 0
        %938 = vmatprep.subr.bf16.mxu0 0
        %939 = vmatpush1.bf16.msra.mxu0 0
        %940 = vmatprep.subr.bf16.mxu0 0
        %941 = vmatpush1.bf16.msra.mxu0 0
        %942 = vmatprep.subr.bf16.mxu0 0
        %943 = vmatpush1.bf16.msra.mxu0 0
        %944 = vmatprep.subr.bf16.mxu0 0
        %945 = vmatpush1.bf16.msra.mxu0 0
        %946 = vmatprep.subr.bf16.mxu0 0
        %947 = vmatpush1.bf16.msra.mxu0 0
        %948 = vmatprep.subr.bf16.mxu0 0
        %949 = vmatpush1.bf16.msra.mxu0 0
        %950 = vmatprep.subr.bf16.mxu0 0
        %951 = vmatpush1.bf16.msra.mxu0 0
        %952 = vmatprep.subr.bf16.mxu0 0
        %953 = vmatpush1.bf16.msra.mxu0 0
        %954 = vmatprep.subr.bf16.mxu0 0
        %955 = vmatpush1.bf16.msra.mxu0 0
        %956 = vmatprep.subr.bf16.mxu0 0
        %957 = vmatpush1.bf16.msra.mxu0 0
        %958 = vmatprep.subr.bf16.mxu0 0
        %959 = vmatpush1.bf16.msra.mxu0 0
        %960 = vmatprep.subr.bf16.mxu0 0
        %961 = vmatpush1.bf16.msra.mxu0 0
        %962 = vmatprep.mubr.bf16.mxu0 0
        %963 = vmatmul.mubr.bf16.gmra.mrb[0].mxu0 %v928
        %v964 = vpop.f32.mrb[0].mxu0
        %v965 = vadd.f32 %v913, %v964
        %v966 = vpop.f32.mrb[0].mxu0
        %v967 = vpop.f32.mrb[0].mxu0
        %v968 = vpop.f32.mrb[0].mxu0
        %969 = vdwg.mxu0
        %v970 = vmul.f32 %v965, 0.5
        %v971 = vmul.f32 %v965, 0.044715
        %v972 = vmul.f32 %v971, %v965
        %v973 = vmul.f32 %v972, %v965
        %v974 = vadd.f32 %v965, %v973
        %v975 = vmul.f32 %v974, 0.7978846
        %v976 = vtanh.pop %v975
        %v977 = vadd.f32 %v976, 1.0
        %v978 = vmul.f32 %v970, %v977
        %v979 = vpack.c.bf16 %v978, %v978
        %v980 = vld [vmem:[%s7] sm:$0xf]
        %v981 = vld [vmem:[%s7 + $0x4] sm:$0xf]
        %v982 = vld [vmem:[%s7 + $0x8] sm:$0xf]
        %v983 = vld [vmem:[%s7 + $0xc] sm:$0xf]
        %v984 = vld [vmem:[%s7 + $0x10] sm:$0xf]
        %v985 = vld [vmem:[%s7 + $0x14] sm:$0xf]
        %v986 = vld [vmem:[%s7 + $0x18] sm:$0xf]
        %v987 = vld [vmem:[%s7 + $0x1c] sm:$0xf]
        %v988 = vld [vmem:[%s8] sm:$0x1]
        %v990 = vlaneseq
        %v991 = vshrl.u32 %v990, 7
        %v992 = vsub.s32 0, %v991
        %v993 = vrot.slane %v988, %v992
        %v1003 = vunpack.c.l.b16 %v980
        %v1004 = vunpack.c.l.b16 %v981
        %v1005 = vunpack.c.l.b16 %v982
        %v1006 = vunpack.c.l.b16 %v983
        %v1007 = vunpack.c.l.b16 %v984
        %v1008 = vunpack.c.l.b16 %v985
        %v1009 = vunpack.c.l.b16 %v986
        %v1010 = vunpack.c.l.b16 %v987
        %v1011 = vpack.c.b16 %v1004, %v1003
        %v1012 = vpack.c.b16 %v1006, %v1005
        %v1013 = vpack.c.b16 %v1008, %v1007
        %v1014 = vpack.c.b16 %v1010, %v1009
        %vm1019 = vcmask 523264
        %v1021 = vsel %vm1019, %v979, 0
        %1023 = vmatprep.subr.bf16.mxu0 0
        %1024 = vmatpush1.bf16.msra.mxu0 %v1011
        %1025 = vmatprep.subr.bf16.mxu0 0
        %1026 = vmatpush1.bf16.msra.mxu0 %v1012
        %1027 = vmatprep.subr.bf16.mxu0 0
        %1028 = vmatpush1.bf16.msra.mxu0 %v1013
        %1029 = vmatprep.subr.bf16.mxu0 0
        %1030 = vmatpush1.bf16.msra.mxu0 %v1014
        %1031 = vmatprep.subr.bf16.mxu0 0
        %1032 = vmatpush1.bf16.msra.mxu0 0
        %1033 = vmatprep.subr.bf16.mxu0 0
        %1034 = vmatpush1.bf16.msra.mxu0 0
        %1035 = vmatprep.subr.bf16.mxu0 0
        %1036 = vmatpush1.bf16.msra.mxu0 0
        %1037 = vmatprep.subr.bf16.mxu0 0
        %1038 = vmatpush1.bf16.msra.mxu0 0
        %1039 = vmatprep.subr.bf16.mxu0 0
        %1040 = vmatpush1.bf16.msra.mxu0 0
        %1041 = vmatprep.subr.bf16.mxu0 0
        %1042 = vmatpush1.bf16.msra.mxu0 0
        %1043 = vmatprep.subr.bf16.mxu0 0
        %1044 = vmatpush1.bf16.msra.mxu0 0
        %1045 = vmatprep.subr.bf16.mxu0 0
        %1046 = vmatpush1.bf16.msra.mxu0 0
        %1047 = vmatprep.subr.bf16.mxu0 0
        %1048 = vmatpush1.bf16.msra.mxu0 0
        %1049 = vmatprep.subr.bf16.mxu0 0
        %1050 = vmatpush1.bf16.msra.mxu0 0
        %1051 = vmatprep.subr.bf16.mxu0 0
        %1052 = vmatpush1.bf16.msra.mxu0 0
        %1053 = vmatprep.subr.bf16.mxu0 0
        %1054 = vmatpush1.bf16.msra.mxu0 0
        %1055 = vmatprep.mubr.bf16.mxu0 0
        %1056 = vmatmul.mubr.bf16.gmra.mrb[0].mxu0 %v1021
        %v1057 = vpop.f32.mrb[0].mxu0
        %v1058 = vadd.f32 %v993, %v1057
        %v1059 = vpop.f32.mrb[0].mxu0
        %v1060 = vpop.f32.mrb[0].mxu0
        %v1061 = vpop.f32.mrb[0].mxu0
        %1062 = vdwg.mxu0
        %v1063 = vadd.f32 %v887, %v1058
        %1064 = vst.msk [vmem:[%s323] sm:$0xff] %vm332, %v1063
        %s1065 = sand.u32 %s225, 1
        %s1066 = scalar_lea.sflag [#allocation3], %s1065
        %s1067 = sand.u32 %s225, 1
        %s1068 = smul.addr %s1067, 8
        %s1069 = scalar_lea.vmem [#allocation2], %s1068
        // Predicated region
        $region57: #{tpu_custom_call.1} parent=55 // pred_check
          %p1070 = pneg %p235
        $region58: #{tpu_custom_call.1} parent=55 // pred_check_branch
          %1072 = sbr.rel (%p1070) target = $region60
        $region59: #{tpu_custom_call.1} parent=55 // pred_region
          %s1074 = ssub.s32 128, 128
          %1075 = vsyncadd %s1066, %s1074
          %s1076 = smul.addr %s23, 128
          %s1077 = scalar_lea.hbm %s9, %s1076
          %s1079 = sshll.u32 %s1069, 4
          %s1080 = int_to_ptr.vmem [resolvable:$true] %s1079
          %1082 = dma.vmem_to_hbm [thread:$0]  %s1080, 128, %s1077, %s1066
        $region60: #{tpu_custom_call.1} parent=55 // pred_fallthru
          _
      $region56: #{tpu_custom_call.1} parent=5 // pred_fallthru
        _
      %p1083 = scmp.le.s32.totalorder 2, %s18
      // Predicated region
      $region61: #{tpu_custom_call.1} parent=5 // pred_check
        %p1084 = pneg %p1083
      $region62: #{tpu_custom_call.1} parent=5 // pred_check_branch
        %1086 = sbr.rel (%p1084) target = $region64
      $region63: #{tpu_custom_call.1} parent=5 // pred_region
        %s1087 = ssub.s32 %s18, 2
        // Predicated region
        $region65: #{tpu_custom_call.1} parent=63 // pred_check
          %p1088 = pneg %p241
        $region66: #{tpu_custom_call.1} parent=63 // pred_check_branch
          %1090 = sbr.rel (%p1088) target = $region68
        $region67: #{tpu_custom_call.1} parent=63 // pred_region
          %s1091 = sand.u32 %s226, 1
          %s1092 = scalar_lea.sflag [#allocation3], %s1091
          %s1093 = sand.u32 %s226, 1
          %s1094 = smul.addr %s1093, 8
          %s1095 = scalar_lea.vmem [#allocation2], %s1094
          %1096 = dma.done %s1092, 128
        $region68: #{tpu_custom_call.1} parent=63 // pred_fallthru
          _
      $region64: #{tpu_custom_call.1} parent=5 // pred_fallthru
        _
    $region6: #{tpu_custom_call.1} parent=1 // loop_footer
      %s22 = sadd.s32 1, %s18
    $region7: #{tpu_custom_call.1} parent=1 // loop_footer_branch
      %17 = sbr.rel target = $region3
    $region8: #{tpu_custom_call.1} parent=1 // loop_exit
      _
    %1097 = vsyncpa [#allocation3], 1
    %s1098 = scalar_lea.sflag [#allocation3], 1
    %1099 = vsyncpa %s1098, 1

</llo_original>
